<compile_context>
chip_gen: v7x
topology: tpu7x:2x2x1
jax: 0.10.0
libtpu: 0.0.40
codegen_flags: <defaults>
</compile_context>

<pallas_src>
import functools

import numpy as np
import jax
import jax.numpy as jnp
from jax.experimental import pallas as pl
from jax.experimental.pallas import tpu as pltpu

EPS = 1e-5          # torch.nn.GroupNorm default eps
NUM_GROUPS = 8      # GroupNorm(8, c_out)
_LANE = 128


def _pick_group_split(c_out):
    """Split GroupNorm groups over a grid axis only when the matmul M stays >= 256."""
    rows = 4 * c_out
    for gs in (8, 4, 2):
        if NUM_GROUPS % gs == 0 and rows % gs == 0 and (rows // gs) % 8 == 0 \
                and rows // gs >= 256:
            return gs
    return 1


def _tconv_gn_relu_kernel(x_ref, w_ref, p_ref, m_ref, o_ref, *,
                          n_grp, rpg, hw, hwp, img_w):
    """One (batch, group-tile) grid step.

    x_ref : (1, Cin, HWp)   f32   raw input image, lanes = h*W + w (zero-padded to HWp)
    w_ref : (4, R, Cin)     bf16  parity-decomposed weights, slice s = shift dh*2+dw
    p_ref : (3, R, 1)       f32   [conv bias, GN gamma, GN beta] per output row
    m_ref : (4, HWp)        f32   {0,1} masks: [w<W-1, h<H-1, both, lane<HW]
    o_ref : (1, R, HWp)     bf16  output rows (row = co*4 + ph*2 + pw), lane-dense
    """
    x = x_ref[0]                                      # (Cin, HWp) f32
    masks = m_ref[...]                                # (4, HWp)  f32

    # ---- in-kernel 4-shift stack + one MXU matmul per shift, f32 accumulation ----
    y = jnp.dot(w_ref[0], x.astype(jnp.bfloat16),
                preferred_element_type=jnp.float32)   # shift (0, 0)
    offs = (1, img_w, img_w + 1)                      # lane offsets for (0,1), (1,0), (1,1)
    for s in (1, 2, 3):
        xs = pltpu.roll(x, shift=(hwp - offs[s - 1]) % hwp, axis=1)   # x[.., lane + off]
        xs = xs * masks[s - 1:s]                      # zero taps that fall off the image
        y = y + jnp.dot(w_ref[s], xs.astype(jnp.bfloat16),
                        preferred_element_type=jnp.float32)
    y = y + p_ref[0]                                  # conv bias, (R, 1)

    # ---- GroupNorm statistics (single pass, f32); group rows are contiguous ----
    if hwp != hw:
        yv = y * masks[3:4]                           # ignore padded lanes in the stats
    else:
        yv = y
    ch_s = jnp.sum(yv, axis=1, keepdims=True)         # (R, 1)
    ch_q = jnp.sum(yv * yv, axis=1, keepdims=True)    # (R, 1)
    denom = float(rpg * hw)                           # = cg * (2H) * (2W) elems per group

    scale_parts, shift_parts = [], []
    for g in range(n_grp):                            # static, <= 8 iterations
        lo, hi = g * rpg, (g + 1) * rpg
        gsum = jnp.sum(ch_s[lo:hi], axis=0, keepdims=True)    # (1, 1)
        gsq = jnp.sum(ch_q[lo:hi], axis=0, keepdims=True)     # (1, 1)
        mu = gsum / denom
        var = gsq / denom - mu * mu                   # biased var (matches GroupNorm)
        inv = jax.lax.rsqrt(var + EPS)
        scale_parts.append(jnp.zeros((rpg, 1), jnp.float32) + inv)
        shift_parts.append(jnp.zeros((rpg, 1), jnp.float32) + (-mu * inv))
    scale = jnp.concatenate(scale_parts, axis=0)      # (R, 1)
    shift = jnp.concatenate(shift_parts, axis=0)      # (R, 1)

    a = p_ref[1] * scale                              # gamma folded into the scale
    b = p_ref[1] * shift + p_ref[2]                   # beta folded into the shift
    # ---- normalize + affine + ReLU, bf16 lane-dense store ----
    o_ref[0] = jnp.maximum(y * a + b, 0.0).astype(o_ref.dtype)


def _subpixel_weights(weight):
    """ConvTranspose2d weight (Cin, Cout, 3, 3) -> (4, 4*Cout, Cin) parity/shift tensor.

    slice s = dh*2 + dw (input shift), row = co*4 + ph*2 + pw (output parity).
    stride=2/pad=1/k=3: even parity uses tap 1 (shift 0); odd parity uses tap 2 (shift 0)
    and tap 0 (shift 1).  Missing (parity, shift) pairs stay zero.
    """
    c_in, c_out, k, _ = weight.shape
    assert k == 3
    tap = {(0, 0): 1, (1, 0): 2, (1, 1): 0}           # (parity, shift) -> kernel index
    w4 = jnp.zeros((4, 4 * c_out, c_in), weight.dtype)
    for ph in range(2):
        for pw in range(2):
            p = ph * 2 + pw
            for dh in range(2):
                for dw in range(2):
                    if (ph, dh) in tap and (pw, dw) in tap:
                        kh, kw = tap[(ph, dh)], tap[(pw, dw)]
                        s = dh * 2 + dw
                        w4 = w4.at[s, p::4, :].set(weight[:, :, kh, kw].T)  # (Cout, Cin)
    return w4


def transpose_conv_block(x_nchw, weight, bias, gamma, beta, *, out_dtype=jnp.bfloat16):
    """Forward of TransposeConvBlock.  x: (B, Cin, H, W) -> (B, Cout, 2H, 2W)."""
    B, Cin, H, W = x_nchw.shape
    Cin_w, Cout, k, _ = weight.shape
    assert Cin == Cin_w and k == 3
    assert Cout % NUM_GROUPS == 0

    HW = H * W
    HWp = ((HW + _LANE - 1) // _LANE) * _LANE         # keep stores unmasked / lane-dense
    gs_split = _pick_group_split(Cout)
    R = 4 * Cout // gs_split
    cg = Cout // NUM_GROUPS
    n_grp = NUM_GROUPS // gs_split
    rpg = 4 * cg

    # Raw f32 activations (free reshape); the bf16 MXU cast happens inside the kernel.
    x2 = x_nchw.reshape(B, Cin, HW).astype(jnp.float32)
    if HWp != HW:
        x2 = jnp.pad(x2, ((0, 0), (0, 0), (0, HWp - HW)))

    w4 = _subpixel_weights(weight).astype(jnp.bfloat16)              # (4, 4Cout, Cin)
    params = jnp.stack([jnp.repeat(bias.astype(jnp.float32), 4),
                        jnp.repeat(gamma.astype(jnp.float32), 4),
                        jnp.repeat(beta.astype(jnp.float32), 4)])[..., None]  # (3,4Cout,1)

    lanes = np.arange(HWp)
    hh, ww = lanes // W, lanes % W
    valid = lanes < HW
    masks = jnp.asarray(np.stack([valid & (ww < W - 1),
                                  valid & (hh < H - 1),
                                  valid & (ww < W - 1) & (hh < H - 1),
                                  valid]).astype(np.float32))        # (4, HWp)

    kernel = functools.partial(_tconv_gn_relu_kernel, n_grp=n_grp, rpg=rpg,
                               hw=HW, hwp=HWp, img_w=W)

    out_isz = jnp.dtype(out_dtype).itemsize
    flops = 2 * B * (4 * Cout) * (4 * Cin) * HW
    bytes_acc = (B * Cin * HWp * 4 + 4 * 4 * Cout * Cin * 2 + 3 * 4 * Cout * 4
                 + 4 * HWp * 4 + B * 4 * Cout * HWp * out_isz)

    # Explicit VMEM budget (v5e default scoped VMEM is 16 MiB; v7x physical is 64 MiB).
    blk_bytes = (Cin * HWp * 4 + 4 * R * max(Cin, _LANE) * 2 + 3 * R * _LANE * 4
                 + 4 * HWp * 4 + R * HWp * out_isz)
    tmp_bytes = 4 * R * HWp * 4 + 3 * Cin * HWp * 4
    vmem_limit = int(min(64 * 2 ** 20, max(32 * 2 ** 20, 2 * blk_bytes + tmp_bytes)))
    # TODO(synk): for very large images (blocks beyond ~64 MiB on v7x) add an HW grid
    # axis with two-pass GroupNorm instead of relying on one full-image block.

    out = pl.pallas_call(
        kernel,
        out_shape=jax.ShapeDtypeStruct((B, 4 * Cout, HWp), out_dtype),
        grid_spec=pltpu.PrefetchScalarGridSpec(
            num_scalar_prefetch=0,
            grid=(B, gs_split),
            in_specs=[
                pl.BlockSpec((1, Cin, HWp), lambda b, t: (b, 0, 0)),
                pl.BlockSpec((4, R, Cin), lambda b, t: (0, t, 0)),
                pl.BlockSpec((3, R, 1), lambda b, t: (0, t, 0)),
                pl.BlockSpec((4, HWp), lambda b, t: (0, 0)),
            ],
            out_specs=pl.BlockSpec((1, R, HWp), lambda b, t: (b, t, 0)),
        ),
        compiler_params=pltpu.CompilerParams(
            dimension_semantics=("parallel", "parallel"),
            vmem_limit_bytes=vmem_limit),
        cost_estimate=pl.CostEstimate(flops=flops,
                                      transcendentals=B * NUM_GROUPS,
                                      bytes_accessed=bytes_acc),
    )(x2, w4, params, masks)

    if HWp != HW:
        out = out[:, :, :HW]
    # (B, 4*Cout, H*W) with row = co*4 + ph*2 + pw  ->  NCHW (B, Cout, 2H, 2W).
    # Now a bf16 pass (half the old traffic).
    # TODO(synk): fuse this parity pixel-shuffle into the kernel store; it needs a
    # stride-2 lane interleave (relayout) in VMEM which Mosaic does not lower robustly.
    out = out.reshape(B, Cout, 2, 2, H, W).transpose(0, 1, 4, 2, 5, 3)
    return out.reshape(B, Cout, 2 * H, 2 * W)


def reference(x, weight, bias, gamma, beta, quantize_inputs=False):
    """Pure-JAX ConvTranspose2d + GroupNorm + ReLU.  quantize_inputs mirrors the kernel's
    deliberate bf16 MXU inputs (products & accumulation stay f32)."""
    if quantize_inputs:
        x = x.astype(jnp.bfloat16).astype(jnp.float32)
        weight = weight.astype(jnp.bfloat16).astype(jnp.float32)
    wf = jnp.transpose(weight[:, :, ::-1, ::-1], (1, 0, 2, 3))       # (Cout, Cin, k, k)
    y = jax.lax.conv_general_dilated(
        x, wf, window_strides=(1, 1), padding=[(1, 2), (1, 2)],
        lhs_dilation=(2, 2), dimension_numbers=("NCHW", "OIHW", "NCHW"))
    y = y + bias[None, :, None, None]
    B, C, OH, OW = y.shape
    cg = C // NUM_GROUPS
    yg = y.reshape(B, NUM_GROUPS, cg * OH * OW)
    mean = yg.mean(-1, keepdims=True)
    var = ((yg - mean) ** 2).mean(-1, keepdims=True)
    yn = ((yg - mean) / jnp.sqrt(var + EPS)).reshape(B, C, OH, OW)
    out = yn * gamma[None, :, None, None] + beta[None, :, None, None]
    return jnp.maximum(out, 0.0)


if __name__ == "__main__":
    B, Cin, Cout, H, W, k = 2, 4, 16, 16, 16, 3

    key = jax.random.PRNGKey(0)
    kx, kw, kb = jax.random.split(key, 3)

    x = jax.random.normal(kx, (B, Cin, H, W), jnp.float32)

    # Kaiming-normal init for ConvTranspose2d weight (a=0 -> gain sqrt(2)); torch's
    # fan_in for a ConvTranspose2d weight of shape (Cin, Cout, k, k) is Cout*k*k.
    fan_in = Cout * k * k
    weight = jax.random.normal(kw, (Cin, Cout, k, k), jnp.float32) * np.sqrt(2.0 / fan_in)
    bias = jax.random.uniform(kb, (Cout,), jnp.float32,
                              -1.0 / np.sqrt(fan_in), 1.0 / np.sqrt(fan_in))
    gamma = jnp.ones((Cout,), jnp.float32)   # GroupNorm default weight
    beta = jnp.zeros((Cout,), jnp.float32)   # GroupNorm default bias

    out = jax.block_until_ready(transpose_conv_block(x, weight, bias, gamma, beta))
    assert out.shape == (B, Cout, 2 * H, 2 * W), out.shape
    assert out.dtype == jnp.bfloat16, out.dtype
    out_f = out.astype(jnp.float32)

    # Tight check vs. a reference fed the same bf16-rounded MXU inputs (isolates kernel
    # correctness from the intentional bf16 quantization of matmul operands + output).
    ref_q = jax.block_until_ready(reference(x, weight, bias, gamma, beta, True))
    err_q = float(jnp.max(jnp.abs(out_f - ref_q)))
    assert err_q < 3e-2, f"max abs error vs bf16-input reference: {err_q}"

    # Looser check vs. the full-f32 reference (difference = bf16 input/output rounding).
    ref_f = jax.block_until_ready(reference(x, weight, bias, gamma, beta, False))
    err_f = float(jnp.max(jnp.abs(out_f - ref_f)))
    assert err_f < 8e-2, f"max abs error vs f32 reference: {err_f}"

    print("KERNEL_OK")
</pallas_src>

<mosaic_0001>
module attributes {stable_mosaic.version = 11 : i64} {
  func.func @_tconv_gn_relu_kernel(%arg0: i32, %arg1: i32, %arg2: memref<1x4x256xf32, #tpu.memory_space<vmem>>, %arg3: memref<4x64x4xbf16, #tpu.memory_space<vmem>>, %arg4: memref<3x64x1xf32, #tpu.memory_space<vmem>>, %arg5: memref<4x256xf32, #tpu.memory_space<vmem>>, %arg6: memref<1x64x256xbf16, #tpu.memory_space<vmem>>) attributes {dimension_semantics = [#tpu.dimension_semantics<parallel>, #tpu.dimension_semantics<parallel>], iteration_bounds = array<i64: 2, 1>, scalar_prefetch = 0 : i64, scratch_operands = 0 : i64, tpu.core_type = #tpu.core_type<tc>, window_params = [{transform_indices = @transform_0, window_bounds = array<i64: 1, 4, 256>}, {transform_indices = @transform_1, window_bounds = array<i64: 4, 64, 4>}, {transform_indices = @transform_2, window_bounds = array<i64: 3, 64, 1>}, {pipeline_mode = #tpu.pipeline_mode<synchronous>, transform_indices = @transform_3, window_bounds = array<i64: 4, 256>}, {transform_indices = @transform_4, window_bounds = array<i64: 1, 64, 256>}]} {
    %c0 = arith.constant 0 : index
    %c0_0 = arith.constant 0 : index
    %c0_1 = arith.constant 0 : index
    %0 = vector.load %arg2[%c0, %c0_0, %c0_1] : memref<1x4x256xf32, #tpu.memory_space<vmem>>, vector<1x4x256xf32>
    %1 = vector.shape_cast %0 : vector<1x4x256xf32> to vector<4x256xf32>
    %c0_2 = arith.constant 0 : index
    %c0_3 = arith.constant 0 : index
    %2 = vector.load %arg5[%c0_2, %c0_3] : memref<4x256xf32, #tpu.memory_space<vmem>>, vector<4x256xf32>
    %c0_4 = arith.constant 0 : index
    %c0_5 = arith.constant 0 : index
    %c0_6 = arith.constant 0 : index
    %3 = vector.load %arg3[%c0_4, %c0_5, %c0_6] : memref<4x64x4xbf16, #tpu.memory_space<vmem>>, vector<1x64x4xbf16>
    %4 = vector.shape_cast %3 : vector<1x64x4xbf16> to vector<64x4xbf16>
    %5 = arith.truncf %1 : vector<4x256xf32> to vector<4x256xbf16>
    %cst = arith.constant dense<0.000000e+00> : vector<64x256xf32>
    %6 = tpu.matmul %4, %5, %cst {dimension_numbers = #tpu.dot_dimension_numbers<[1], [0], [0], [1], [0, 0, 1, 1], [], []>} : vector<64x4xbf16>, vector<4x256xbf16>, vector<64x256xf32> -> vector<64x256xf32>
    %c255_i32 = arith.constant 255 : i32
    %7 = tpu.dynamic_rotate %1 by %c255_i32 dim 1 : vector<4x256xf32>, i32 -> vector<4x256xf32>
    %8 = vector.extract_strided_slice %2 {offsets = [0, 0], sizes = [1, 256], strides = [1, 1]} : vector<4x256xf32> to vector<1x256xf32>
    %9 = vector.broadcast %8 : vector<1x256xf32> to vector<4x256xf32>
    %10 = arith.mulf %7, %9 : vector<4x256xf32>
    %c1 = arith.constant 1 : index
    %c0_7 = arith.constant 0 : index
    %c0_8 = arith.constant 0 : index
    %11 = vector.load %arg3[%c1, %c0_7, %c0_8] : memref<4x64x4xbf16, #tpu.memory_space<vmem>>, vector<1x64x4xbf16>
    %12 = vector.shape_cast %11 : vector<1x64x4xbf16> to vector<64x4xbf16>
    %13 = arith.truncf %10 : vector<4x256xf32> to vector<4x256xbf16>
    %cst_9 = arith.constant dense<0.000000e+00> : vector<64x256xf32>
    %14 = tpu.matmul %12, %13, %cst_9 {dimension_numbers = #tpu.dot_dimension_numbers<[1], [0], [0], [1], [0, 0, 1, 1], [], []>} : vector<64x4xbf16>, vector<4x256xbf16>, vector<64x256xf32> -> vector<64x256xf32>
    %15 = arith.addf %6, %14 : vector<64x256xf32>
    %c240_i32 = arith.constant 240 : i32
    %16 = tpu.dynamic_rotate %1 by %c240_i32 dim 1 : vector<4x256xf32>, i32 -> vector<4x256xf32>
    %17 = vector.extract_strided_slice %2 {offsets = [1, 0], sizes = [1, 256], strides = [1, 1]} : vector<4x256xf32> to vector<1x256xf32>
    %18 = vector.broadcast %17 : vector<1x256xf32> to vector<4x256xf32>
    %19 = arith.mulf %16, %18 : vector<4x256xf32>
    %c2 = arith.constant 2 : index
    %c0_10 = arith.constant 0 : index
    %c0_11 = arith.constant 0 : index
    %20 = vector.load %arg3[%c2, %c0_10, %c0_11] : memref<4x64x4xbf16, #tpu.memory_space<vmem>>, vector<1x64x4xbf16>
    %21 = vector.shape_cast %20 : vector<1x64x4xbf16> to vector<64x4xbf16>
    %22 = arith.truncf %19 : vector<4x256xf32> to vector<4x256xbf16>
    %cst_12 = arith.constant dense<0.000000e+00> : vector<64x256xf32>
    %23 = tpu.matmul %21, %22, %cst_12 {dimension_numbers = #tpu.dot_dimension_numbers<[1], [0], [0], [1], [0, 0, 1, 1], [], []>} : vector<64x4xbf16>, vector<4x256xbf16>, vector<64x256xf32> -> vector<64x256xf32>
    %24 = arith.addf %15, %23 : vector<64x256xf32>
    %c239_i32 = arith.constant 239 : i32
    %25 = tpu.dynamic_rotate %1 by %c239_i32 dim 1 : vector<4x256xf32>, i32 -> vector<4x256xf32>
    %26 = vector.extract_strided_slice %2 {offsets = [2, 0], sizes = [1, 256], strides = [1, 1]} : vector<4x256xf32> to vector<1x256xf32>
    %27 = vector.broadcast %26 : vector<1x256xf32> to vector<4x256xf32>
    %28 = arith.mulf %25, %27 : vector<4x256xf32>
    %c3 = arith.constant 3 : index
    %c0_13 = arith.constant 0 : index
    %c0_14 = arith.constant 0 : index
    %29 = vector.load %arg3[%c3, %c0_13, %c0_14] : memref<4x64x4xbf16, #tpu.memory_space<vmem>>, vector<1x64x4xbf16>
    %30 = vector.shape_cast %29 : vector<1x64x4xbf16> to vector<64x4xbf16>
    %31 = arith.truncf %28 : vector<4x256xf32> to vector<4x256xbf16>
    %cst_15 = arith.constant dense<0.000000e+00> : vector<64x256xf32>
    %32 = tpu.matmul %30, %31, %cst_15 {dimension_numbers = #tpu.dot_dimension_numbers<[1], [0], [0], [1], [0, 0, 1, 1], [], []>} : vector<64x4xbf16>, vector<4x256xbf16>, vector<64x256xf32> -> vector<64x256xf32>
    %33 = arith.addf %24, %32 : vector<64x256xf32>
    %c0_16 = arith.constant 0 : index
    %c0_17 = arith.constant 0 : index
    %c0_18 = arith.constant 0 : index
    %34 = vector.load %arg4[%c0_16, %c0_17, %c0_18] : memref<3x64x1xf32, #tpu.memory_space<vmem>>, vector<1x64x1xf32>
    %35 = vector.shape_cast %34 : vector<1x64x1xf32> to vector<64x1xf32>
    %36 = vector.broadcast %35 : vector<64x1xf32> to vector<64x256xf32>
    %37 = arith.addf %33, %36 : vector<64x256xf32>
    %cst_19 = arith.constant dense<0.000000e+00> : vector<64xf32>
    %38 = vector.multi_reduction <add>, %37, %cst_19 [1] : vector<64x256xf32> to vector<64xf32>
    %39 = vector.shape_cast %38 : vector<64xf32> to vector<64x1xf32>
    %40 = arith.mulf %37, %37 : vector<64x256xf32>
    %cst_20 = arith.constant dense<0.000000e+00> : vector<64xf32>
    %41 = vector.multi_reduction <add>, %40, %cst_20 [1] : vector<64x256xf32> to vector<64xf32>
    %42 = vector.shape_cast %41 : vector<64xf32> to vector<64x1xf32>
    %43 = vector.extract_strided_slice %39 {offsets = [0, 0], sizes = [8, 1], strides = [1, 1]} : vector<64x1xf32> to vector<8x1xf32>
    %cst_21 = arith.constant dense<0.000000e+00> : vector<1xf32>
    %44 = vector.multi_reduction <add>, %43, %cst_21 [0] : vector<8x1xf32> to vector<1xf32>
    %45 = vector.shape_cast %44 : vector<1xf32> to vector<1x1xf32>
    %46 = vector.extract_strided_slice %42 {offsets = [0, 0], sizes = [8, 1], strides = [1, 1]} : vector<64x1xf32> to vector<8x1xf32>
    %cst_22 = arith.constant dense<0.000000e+00> : vector<1xf32>
    %47 = vector.multi_reduction <add>, %46, %cst_22 [0] : vector<8x1xf32> to vector<1xf32>
    %48 = vector.shape_cast %47 : vector<1xf32> to vector<1x1xf32>
    %cst_23 = arith.constant 2.048000e+03 : f32
    %49 = vector.broadcast %cst_23 : f32 to vector<1x1xf32>
    %50 = arith.divf %45, %49 : vector<1x1xf32>
    %cst_24 = arith.constant 2.048000e+03 : f32
    %51 = vector.broadcast %cst_24 : f32 to vector<1x1xf32>
    %52 = arith.divf %48, %51 : vector<1x1xf32>
    %53 = arith.mulf %50, %50 : vector<1x1xf32>
    %54 = arith.subf %52, %53 : vector<1x1xf32>
    %cst_25 = arith.constant 9.99999974E-6 : f32
    %55 = vector.broadcast %cst_25 : f32 to vector<1x1xf32>
    %56 = arith.addf %54, %55 : vector<1x1xf32>
    %57 = math.rsqrt %56 : vector<1x1xf32>
    %cst_26 = arith.constant 0.000000e+00 : f32
    %58 = vector.broadcast %cst_26 : f32 to vector<8x1xf32>
    %59 = vector.broadcast %57 : vector<1x1xf32> to vector<8x1xf32>
    %60 = arith.addf %58, %59 : vector<8x1xf32>
    %cst_27 = arith.constant 0.000000e+00 : f32
    %61 = vector.broadcast %cst_27 : f32 to vector<8x1xf32>
    %cst_28 = arith.constant 0.000000e+00 : f32
    %62 = vector.broadcast %cst_28 : f32 to vector<1x1xf32>
    %63 = arith.subf %62, %50 : vector<1x1xf32>
    %64 = arith.mulf %63, %57 : vector<1x1xf32>
    %65 = vector.broadcast %64 : vector<1x1xf32> to vector<8x1xf32>
    %66 = arith.addf %61, %65 : vector<8x1xf32>
    %67 = vector.extract_strided_slice %39 {offsets = [8, 0], sizes = [8, 1], strides = [1, 1]} : vector<64x1xf32> to vector<8x1xf32>
    %cst_29 = arith.constant dense<0.000000e+00> : vector<1xf32>
    %68 = vector.multi_reduction <add>, %67, %cst_29 [0] : vector<8x1xf32> to vector<1xf32>
    %69 = vector.shape_cast %68 : vector<1xf32> to vector<1x1xf32>
    %70 = vector.extract_strided_slice %42 {offsets = [8, 0], sizes = [8, 1], strides = [1, 1]} : vector<64x1xf32> to vector<8x1xf32>
    %cst_30 = arith.constant dense<0.000000e+00> : vector<1xf32>
    %71 = vector.multi_reduction <add>, %70, %cst_30 [0] : vector<8x1xf32> to vector<1xf32>
    %72 = vector.shape_cast %71 : vector<1xf32> to vector<1x1xf32>
    %cst_31 = arith.constant 2.048000e+03 : f32
    %73 = vector.broadcast %cst_31 : f32 to vector<1x1xf32>
    %74 = arith.divf %69, %73 : vector<1x1xf32>
    %cst_32 = arith.constant 2.048000e+03 : f32
    %75 = vector.broadcast %cst_32 : f32 to vector<1x1xf32>
    %76 = arith.divf %72, %75 : vector<1x1xf32>
    %77 = arith.mulf %74, %74 : vector<1x1xf32>
    %78 = arith.subf %76, %77 : vector<1x1xf32>
    %cst_33 = arith.constant 9.99999974E-6 : f32
    %79 = vector.broadcast %cst_33 : f32 to vector<1x1xf32>
    %80 = arith.addf %78, %79 : vector<1x1xf32>
    %81 = math.rsqrt %80 : vector<1x1xf32>
    %cst_34 = arith.constant 0.000000e+00 : f32
    %82 = vector.broadcast %cst_34 : f32 to vector<8x1xf32>
    %83 = vector.broadcast %81 : vector<1x1xf32> to vector<8x1xf32>
    %84 = arith.addf %82, %83 : vector<8x1xf32>
    %cst_35 = arith.constant 0.000000e+00 : f32
    %85 = vector.broadcast %cst_35 : f32 to vector<8x1xf32>
    %cst_36 = arith.constant 0.000000e+00 : f32
    %86 = vector.broadcast %cst_36 : f32 to vector<1x1xf32>
    %87 = arith.subf %86, %74 : vector<1x1xf32>
    %88 = arith.mulf %87, %81 : vector<1x1xf32>
    %89 = vector.broadcast %88 : vector<1x1xf32> to vector<8x1xf32>
    %90 = arith.addf %85, %89 : vector<8x1xf32>
    %91 = vector.extract_strided_slice %39 {offsets = [16, 0], sizes = [8, 1], strides = [1, 1]} : vector<64x1xf32> to vector<8x1xf32>
    %cst_37 = arith.constant dense<0.000000e+00> : vector<1xf32>
    %92 = vector.multi_reduction <add>, %91, %cst_37 [0] : vector<8x1xf32> to vector<1xf32>
    %93 = vector.shape_cast %92 : vector<1xf32> to vector<1x1xf32>
    %94 = vector.extract_strided_slice %42 {offsets = [16, 0], sizes = [8, 1], strides = [1, 1]} : vector<64x1xf32> to vector<8x1xf32>
    %cst_38 = arith.constant dense<0.000000e+00> : vector<1xf32>
    %95 = vector.multi_reduction <add>, %94, %cst_38 [0] : vector<8x1xf32> to vector<1xf32>
    %96 = vector.shape_cast %95 : vector<1xf32> to vector<1x1xf32>
    %cst_39 = arith.constant 2.048000e+03 : f32
    %97 = vector.broadcast %cst_39 : f32 to vector<1x1xf32>
    %98 = arith.divf %93, %97 : vector<1x1xf32>
    %cst_40 = arith.constant 2.048000e+03 : f32
    %99 = vector.broadcast %cst_40 : f32 to vector<1x1xf32>
    %100 = arith.divf %96, %99 : vector<1x1xf32>
    %101 = arith.mulf %98, %98 : vector<1x1xf32>
    %102 = arith.subf %100, %101 : vector<1x1xf32>
    %cst_41 = arith.constant 9.99999974E-6 : f32
    %103 = vector.broadcast %cst_41 : f32 to vector<1x1xf32>
    %104 = arith.addf %102, %103 : vector<1x1xf32>
    %105 = math.rsqrt %104 : vector<1x1xf32>
    %cst_42 = arith.constant 0.000000e+00 : f32
    %106 = vector.broadcast %cst_42 : f32 to vector<8x1xf32>
    %107 = vector.broadcast %105 : vector<1x1xf32> to vector<8x1xf32>
    %108 = arith.addf %106, %107 : vector<8x1xf32>
    %cst_43 = arith.constant 0.000000e+00 : f32
    %109 = vector.broadcast %cst_43 : f32 to vector<8x1xf32>
    %cst_44 = arith.constant 0.000000e+00 : f32
    %110 = vector.broadcast %cst_44 : f32 to vector<1x1xf32>
    %111 = arith.subf %110, %98 : vector<1x1xf32>
    %112 = arith.mulf %111, %105 : vector<1x1xf32>
    %113 = vector.broadcast %112 : vector<1x1xf32> to vector<8x1xf32>
    %114 = arith.addf %109, %113 : vector<8x1xf32>
    %115 = vector.extract_strided_slice %39 {offsets = [24, 0], sizes = [8, 1], strides = [1, 1]} : vector<64x1xf32> to vector<8x1xf32>
    %cst_45 = arith.constant dense<0.000000e+00> : vector<1xf32>
    %116 = vector.multi_reduction <add>, %115, %cst_45 [0] : vector<8x1xf32> to vector<1xf32>
    %117 = vector.shape_cast %116 : vector<1xf32> to vector<1x1xf32>
    %118 = vector.extract_strided_slice %42 {offsets = [24, 0], sizes = [8, 1], strides = [1, 1]} : vector<64x1xf32> to vector<8x1xf32>
    %cst_46 = arith.constant dense<0.000000e+00> : vector<1xf32>
    %119 = vector.multi_reduction <add>, %118, %cst_46 [0] : vector<8x1xf32> to vector<1xf32>
    %120 = vector.shape_cast %119 : vector<1xf32> to vector<1x1xf32>
    %cst_47 = arith.constant 2.048000e+03 : f32
    %121 = vector.broadcast %cst_47 : f32 to vector<1x1xf32>
    %122 = arith.divf %117, %121 : vector<1x1xf32>
    %cst_48 = arith.constant 2.048000e+03 : f32
    %123 = vector.broadcast %cst_48 : f32 to vector<1x1xf32>
    %124 = arith.divf %120, %123 : vector<1x1xf32>
    %125 = arith.mulf %122, %122 : vector<1x1xf32>
    %126 = arith.subf %124, %125 : vector<1x1xf32>
    %cst_49 = arith.constant 9.99999974E-6 : f32
    %127 = vector.broadcast %cst_49 : f32 to vector<1x1xf32>
    %128 = arith.addf %126, %127 : vector<1x1xf32>
    %129 = math.rsqrt %128 : vector<1x1xf32>
    %cst_50 = arith.constant 0.000000e+00 : f32
    %130 = vector.broadcast %cst_50 : f32 to vector<8x1xf32>
    %131 = vector.broadcast %129 : vector<1x1xf32> to vector<8x1xf32>
    %132 = arith.addf %130, %131 : vector<8x1xf32>
    %cst_51 = arith.constant 0.000000e+00 : f32
    %133 = vector.broadcast %cst_51 : f32 to vector<8x1xf32>
    %cst_52 = arith.constant 0.000000e+00 : f32
    %134 = vector.broadcast %cst_52 : f32 to vector<1x1xf32>
    %135 = arith.subf %134, %122 : vector<1x1xf32>
    %136 = arith.mulf %135, %129 : vector<1x1xf32>
    %137 = vector.broadcast %136 : vector<1x1xf32> to vector<8x1xf32>
    %138 = arith.addf %133, %137 : vector<8x1xf32>
    %139 = vector.extract_strided_slice %39 {offsets = [32, 0], sizes = [8, 1], strides = [1, 1]} : vector<64x1xf32> to vector<8x1xf32>
    %cst_53 = arith.constant dense<0.000000e+00> : vector<1xf32>
    %140 = vector.multi_reduction <add>, %139, %cst_53 [0] : vector<8x1xf32> to vector<1xf32>
    %141 = vector.shape_cast %140 : vector<1xf32> to vector<1x1xf32>
    %142 = vector.extract_strided_slice %42 {offsets = [32, 0], sizes = [8, 1], strides = [1, 1]} : vector<64x1xf32> to vector<8x1xf32>
    %cst_54 = arith.constant dense<0.000000e+00> : vector<1xf32>
    %143 = vector.multi_reduction <add>, %142, %cst_54 [0] : vector<8x1xf32> to vector<1xf32>
    %144 = vector.shape_cast %143 : vector<1xf32> to vector<1x1xf32>
    %cst_55 = arith.constant 2.048000e+03 : f32
    %145 = vector.broadcast %cst_55 : f32 to vector<1x1xf32>
    %146 = arith.divf %141, %145 : vector<1x1xf32>
    %cst_56 = arith.constant 2.048000e+03 : f32
    %147 = vector.broadcast %cst_56 : f32 to vector<1x1xf32>
    %148 = arith.divf %144, %147 : vector<1x1xf32>
    %149 = arith.mulf %146, %146 : vector<1x1xf32>
    %150 = arith.subf %148, %149 : vector<1x1xf32>
    %cst_57 = arith.constant 9.99999974E-6 : f32
    %151 = vector.broadcast %cst_57 : f32 to vector<1x1xf32>
    %152 = arith.addf %150, %151 : vector<1x1xf32>
    %153 = math.rsqrt %152 : vector<1x1xf32>
    %cst_58 = arith.constant 0.000000e+00 : f32
    %154 = vector.broadcast %cst_58 : f32 to vector<8x1xf32>
    %155 = vector.broadcast %153 : vector<1x1xf32> to vector<8x1xf32>
    %156 = arith.addf %154, %155 : vector<8x1xf32>
    %cst_59 = arith.constant 0.000000e+00 : f32
    %157 = vector.broadcast %cst_59 : f32 to vector<8x1xf32>
    %cst_60 = arith.constant 0.000000e+00 : f32
    %158 = vector.broadcast %cst_60 : f32 to vector<1x1xf32>
    %159 = arith.subf %158, %146 : vector<1x1xf32>
    %160 = arith.mulf %159, %153 : vector<1x1xf32>
    %161 = vector.broadcast %160 : vector<1x1xf32> to vector<8x1xf32>
    %162 = arith.addf %157, %161 : vector<8x1xf32>
    %163 = vector.extract_strided_slice %39 {offsets = [40, 0], sizes = [8, 1], strides = [1, 1]} : vector<64x1xf32> to vector<8x1xf32>
    %cst_61 = arith.constant dense<0.000000e+00> : vector<1xf32>
    %164 = vector.multi_reduction <add>, %163, %cst_61 [0] : vector<8x1xf32> to vector<1xf32>
    %165 = vector.shape_cast %164 : vector<1xf32> to vector<1x1xf32>
    %166 = vector.extract_strided_slice %42 {offsets = [40, 0], sizes = [8, 1], strides = [1, 1]} : vector<64x1xf32> to vector<8x1xf32>
    %cst_62 = arith.constant dense<0.000000e+00> : vector<1xf32>
    %167 = vector.multi_reduction <add>, %166, %cst_62 [0] : vector<8x1xf32> to vector<1xf32>
    %168 = vector.shape_cast %167 : vector<1xf32> to vector<1x1xf32>
    %cst_63 = arith.constant 2.048000e+03 : f32
    %169 = vector.broadcast %cst_63 : f32 to vector<1x1xf32>
    %170 = arith.divf %165, %169 : vector<1x1xf32>
    %cst_64 = arith.constant 2.048000e+03 : f32
    %171 = vector.broadcast %cst_64 : f32 to vector<1x1xf32>
    %172 = arith.divf %168, %171 : vector<1x1xf32>
    %173 = arith.mulf %170, %170 : vector<1x1xf32>
    %174 = arith.subf %172, %173 : vector<1x1xf32>
    %cst_65 = arith.constant 9.99999974E-6 : f32
    %175 = vector.broadcast %cst_65 : f32 to vector<1x1xf32>
    %176 = arith.addf %174, %175 : vector<1x1xf32>
    %177 = math.rsqrt %176 : vector<1x1xf32>
    %cst_66 = arith.constant 0.000000e+00 : f32
    %178 = vector.broadcast %cst_66 : f32 to vector<8x1xf32>
    %179 = vector.broadcast %177 : vector<1x1xf32> to vector<8x1xf32>
    %180 = arith.addf %178, %179 : vector<8x1xf32>
    %cst_67 = arith.constant 0.000000e+00 : f32
    %181 = vector.broadcast %cst_67 : f32 to vector<8x1xf32>
    %cst_68 = arith.constant 0.000000e+00 : f32
    %182 = vector.broadcast %cst_68 : f32 to vector<1x1xf32>
    %183 = arith.subf %182, %170 : vector<1x1xf32>
    %184 = arith.mulf %183, %177 : vector<1x1xf32>
    %185 = vector.broadcast %184 : vector<1x1xf32> to vector<8x1xf32>
    %186 = arith.addf %181, %185 : vector<8x1xf32>
    %187 = vector.extract_strided_slice %39 {offsets = [48, 0], sizes = [8, 1], strides = [1, 1]} : vector<64x1xf32> to vector<8x1xf32>
    %cst_69 = arith.constant dense<0.000000e+00> : vector<1xf32>
    %188 = vector.multi_reduction <add>, %187, %cst_69 [0] : vector<8x1xf32> to vector<1xf32>
    %189 = vector.shape_cast %188 : vector<1xf32> to vector<1x1xf32>
    %190 = vector.extract_strided_slice %42 {offsets = [48, 0], sizes = [8, 1], strides = [1, 1]} : vector<64x1xf32> to vector<8x1xf32>
    %cst_70 = arith.constant dense<0.000000e+00> : vector<1xf32>
    %191 = vector.multi_reduction <add>, %190, %cst_70 [0] : vector<8x1xf32> to vector<1xf32>
    %192 = vector.shape_cast %191 : vector<1xf32> to vector<1x1xf32>
    %cst_71 = arith.constant 2.048000e+03 : f32
    %193 = vector.broadcast %cst_71 : f32 to vector<1x1xf32>
    %194 = arith.divf %189, %193 : vector<1x1xf32>
    %cst_72 = arith.constant 2.048000e+03 : f32
    %195 = vector.broadcast %cst_72 : f32 to vector<1x1xf32>
    %196 = arith.divf %192, %195 : vector<1x1xf32>
    %197 = arith.mulf %194, %194 : vector<1x1xf32>
    %198 = arith.subf %196, %197 : vector<1x1xf32>
    %cst_73 = arith.constant 9.99999974E-6 : f32
    %199 = vector.broadcast %cst_73 : f32 to vector<1x1xf32>
    %200 = arith.addf %198, %199 : vector<1x1xf32>
    %201 = math.rsqrt %200 : vector<1x1xf32>
    %cst_74 = arith.constant 0.000000e+00 : f32
    %202 = vector.broadcast %cst_74 : f32 to vector<8x1xf32>
    %203 = vector.broadcast %201 : vector<1x1xf32> to vector<8x1xf32>
    %204 = arith.addf %202, %203 : vector<8x1xf32>
    %cst_75 = arith.constant 0.000000e+00 : f32
    %205 = vector.broadcast %cst_75 : f32 to vector<8x1xf32>
    %cst_76 = arith.constant 0.000000e+00 : f32
    %206 = vector.broadcast %cst_76 : f32 to vector<1x1xf32>
    %207 = arith.subf %206, %194 : vector<1x1xf32>
    %208 = arith.mulf %207, %201 : vector<1x1xf32>
    %209 = vector.broadcast %208 : vector<1x1xf32> to vector<8x1xf32>
    %210 = arith.addf %205, %209 : vector<8x1xf32>
    %211 = vector.extract_strided_slice %39 {offsets = [56, 0], sizes = [8, 1], strides = [1, 1]} : vector<64x1xf32> to vector<8x1xf32>
    %cst_77 = arith.constant dense<0.000000e+00> : vector<1xf32>
    %212 = vector.multi_reduction <add>, %211, %cst_77 [0] : vector<8x1xf32> to vector<1xf32>
    %213 = vector.shape_cast %212 : vector<1xf32> to vector<1x1xf32>
    %214 = vector.extract_strided_slice %42 {offsets = [56, 0], sizes = [8, 1], strides = [1, 1]} : vector<64x1xf32> to vector<8x1xf32>
    %cst_78 = arith.constant dense<0.000000e+00> : vector<1xf32>
    %215 = vector.multi_reduction <add>, %214, %cst_78 [0] : vector<8x1xf32> to vector<1xf32>
    %216 = vector.shape_cast %215 : vector<1xf32> to vector<1x1xf32>
    %cst_79 = arith.constant 2.048000e+03 : f32
    %217 = vector.broadcast %cst_79 : f32 to vector<1x1xf32>
    %218 = arith.divf %213, %217 : vector<1x1xf32>
    %cst_80 = arith.constant 2.048000e+03 : f32
    %219 = vector.broadcast %cst_80 : f32 to vector<1x1xf32>
    %220 = arith.divf %216, %219 : vector<1x1xf32>
    %221 = arith.mulf %218, %218 : vector<1x1xf32>
    %222 = arith.subf %220, %221 : vector<1x1xf32>
    %cst_81 = arith.constant 9.99999974E-6 : f32
    %223 = vector.broadcast %cst_81 : f32 to vector<1x1xf32>
    %224 = arith.addf %222, %223 : vector<1x1xf32>
    %225 = math.rsqrt %224 : vector<1x1xf32>
    %cst_82 = arith.constant 0.000000e+00 : f32
    %226 = vector.broadcast %cst_82 : f32 to vector<8x1xf32>
    %227 = vector.broadcast %225 : vector<1x1xf32> to vector<8x1xf32>
    %228 = arith.addf %226, %227 : vector<8x1xf32>
    %cst_83 = arith.constant 0.000000e+00 : f32
    %229 = vector.broadcast %cst_83 : f32 to vector<8x1xf32>
    %cst_84 = arith.constant 0.000000e+00 : f32
    %230 = vector.broadcast %cst_84 : f32 to vector<1x1xf32>
    %231 = arith.subf %230, %218 : vector<1x1xf32>
    %232 = arith.mulf %231, %225 : vector<1x1xf32>
    %233 = vector.broadcast %232 : vector<1x1xf32> to vector<8x1xf32>
    %234 = arith.addf %229, %233 : vector<8x1xf32>
    %235 = tpu.concatenate %60, %84, %108, %132, %156, %180, %204, %228 in 0 : vector<8x1xf32>, vector<8x1xf32>, vector<8x1xf32>, vector<8x1xf32>, vector<8x1xf32>, vector<8x1xf32>, vector<8x1xf32>, vector<8x1xf32> -> vector<64x1xf32>
    %236 = tpu.concatenate %66, %90, %114, %138, %162, %186, %210, %234 in 0 : vector<8x1xf32>, vector<8x1xf32>, vector<8x1xf32>, vector<8x1xf32>, vector<8x1xf32>, vector<8x1xf32>, vector<8x1xf32>, vector<8x1xf32> -> vector<64x1xf32>
    %c1_85 = arith.constant 1 : index
    %c0_86 = arith.constant 0 : index
    %c0_87 = arith.constant 0 : index
    %237 = vector.load %arg4[%c1_85, %c0_86, %c0_87] : memref<3x64x1xf32, #tpu.memory_space<vmem>>, vector<1x64x1xf32>
    %238 = vector.shape_cast %237 : vector<1x64x1xf32> to vector<64x1xf32>
    %239 = arith.mulf %238, %235 : vector<64x1xf32>
    %c1_88 = arith.constant 1 : index
    %c0_89 = arith.constant 0 : index
    %c0_90 = arith.constant 0 : index
    %240 = vector.load %arg4[%c1_88, %c0_89, %c0_90] : memref<3x64x1xf32, #tpu.memory_space<vmem>>, vector<1x64x1xf32>
    %241 = vector.shape_cast %240 : vector<1x64x1xf32> to vector<64x1xf32>
    %242 = arith.mulf %241, %236 : vector<64x1xf32>
    %c2_91 = arith.constant 2 : index
    %c0_92 = arith.constant 0 : index
    %c0_93 = arith.constant 0 : index
    %243 = vector.load %arg4[%c2_91, %c0_92, %c0_93] : memref<3x64x1xf32, #tpu.memory_space<vmem>>, vector<1x64x1xf32>
    %244 = vector.shape_cast %243 : vector<1x64x1xf32> to vector<64x1xf32>
    %245 = arith.addf %242, %244 : vector<64x1xf32>
    %246 = vector.broadcast %239 : vector<64x1xf32> to vector<64x256xf32>
    %247 = arith.mulf %37, %246 : vector<64x256xf32>
    %248 = vector.broadcast %245 : vector<64x1xf32> to vector<64x256xf32>
    %249 = arith.addf %247, %248 : vector<64x256xf32>
    %cst_94 = arith.constant 0.000000e+00 : f32
    %250 = vector.broadcast %cst_94 : f32 to vector<64x256xf32>
    %251 = arith.maximumf %249, %250 : vector<64x256xf32>
    %252 = arith.truncf %251 : vector<64x256xf32> to vector<64x256xbf16>
    %c0_95 = arith.constant 0 : index
    %c0_96 = arith.constant 0 : index
    %c0_97 = arith.constant 0 : index
    %253 = vector.load %arg6[%c0_95, %c0_96, %c0_97] : memref<1x64x256xbf16, #tpu.memory_space<vmem>>, vector<1x64x256xbf16>
    %254 = vector.shape_cast %253 : vector<1x64x256xbf16> to vector<64x256xbf16>
    %255 = vector.shape_cast %252 : vector<64x256xbf16> to vector<1x64x256xbf16>
    tpu.vector_store %arg6[%c0_95, %c0_96, %c0_97], %255 {strides = array<i32>} : memref<1x64x256xbf16, #tpu.memory_space<vmem>>, vector<1x64x256xbf16>,
    return
  }
  func.func @transform_0(%arg0: i32, %arg1: i32) -> (i32, i32, i32) {
    %c0_i32 = arith.constant 0 : i32
    %c0_i32_0 = arith.constant 0 : i32
    %c0_i32_1 = arith.constant 0 : i32
    return %arg0, %c0_i32, %c0_i32_0 : i32, i32, i32
  }
  func.func @transform_1(%arg0: i32, %arg1: i32) -> (i32, i32, i32) {
    %c0_i32 = arith.constant 0 : i32
    %c0_i32_0 = arith.constant 0 : i32
    %c0_i32_1 = arith.constant 0 : i32
    return %c0_i32, %arg1, %c0_i32_0 : i32, i32, i32
  }
  func.func @transform_2(%arg0: i32, %arg1: i32) -> (i32, i32, i32) {
    %c0_i32 = arith.constant 0 : i32
    %c0_i32_0 = arith.constant 0 : i32
    %c0_i32_1 = arith.constant 0 : i32
    return %c0_i32, %arg1, %c0_i32_0 : i32, i32, i32
  }
  func.func @transform_3(%arg0: i32, %arg1: i32) -> (i32, i32) {
    %c0_i32 = arith.constant 0 : i32
    %c0_i32_0 = arith.constant 0 : i32
    %c0_i32_1 = arith.constant 0 : i32
    return %c0_i32, %c0_i32_0 : i32, i32
  }
  func.func @transform_4(%arg0: i32, %arg1: i32) -> (i32, i32, i32) {
    %c0_i32 = arith.constant 0 : i32
    %c0_i32_0 = arith.constant 0 : i32
    return %arg0, %arg1, %c0_i32 : i32, i32, i32
  }
}

</mosaic_0001>

<llo_original>
// kernel: tpu_custom_call.1
$region0: #{tpu_custom_call.1}
  #allocation0 [shape = 'u32[]', space=smem, size = 0x4, offset = 0x4, fixed_abs, tag = 'smem constant byte address 0x4 - core index']
  #allocation1 [shape = 'u32[144,128]{1,0:T(1,128)}', space=vmem, size = 0x12000, scoped, tag = 'internal scratch']
  %s0 = inlined_call_operand.vmem [shape: f32[2,4,256], index: 0, kind: input, shape index: {}]
  %s1 = inlined_call_operand.vmem [shape: bf16[4,64,4], index: 1, kind: input, shape index: {}]
  %s2 = inlined_call_operand.vmem [shape: f32[3,64,1], index: 2, kind: input, shape index: {}]
  %s3 = inlined_call_operand.vmem [shape: f32[4,256], index: 3, kind: input, shape index: {}]
  %s4 = inlined_call_operand.hbm [shape: bf16[2,64,256], index: 4, kind: output, shape index: {}]
  %s5 = sld [smem:[#allocation0]]
  $region49: #{tpu_custom_call.1} parent=0
    _
  %s7 = ssub.s32 1, %s5
  %s8 = scalar_select 0, %s7, %s5
  $region1: #{tpu_custom_call.1} parent=0
    #allocation2 [shape = 'u8[65536]{0}', space=vmem, size = 0x10000, scoped, tag = 'output window, operand 0']
    #allocation3 [shape = 's32[2]{0}', space=sflag, size = 0x8, scoped, tag = 'scoped memory for tpu_custom_call.1']
    %9 = vsyncpa [#allocation3], 0
    %s10 = scalar_lea.sflag [#allocation3], 1
    %11 = vsyncpa %s10, 0
    loop: start=0, step=1, limit=4
    $region2: #{tpu_custom_call.1} parent=1 // loop_pre_header
      _
    $region3: #{tpu_custom_call.1} parent=1 // loop_header
      %s13 = sphi 0, %s17
      %p14 = scmp.ge.s32.totalorder %s13, 4
      %s20 = sphi 0, %s32
      %s21 = sphi 0, %s28
      %s22 = sphi 0, %s20
      %s23 = sphi 0, %s21
      %s24 = sphi 0, %s22
      %s25 = sphi 0, %s23
      %s35 = sphi 0, %s37
      %s38 = sphi 0, %s35
      %s39 = sphi 0, %s38
      %s55 = sphi 0, %s39
      %s61 = sphi 0, %s63
      %s64 = sphi 0, %s61
      %s65 = sphi 0, %s64
      %s81 = sphi 0, %s65
      %s87 = sphi 0, %s89
      %s90 = sphi 0, %s87
      %s91 = sphi 0, %s90
      %s107 = sphi 0, %s91
      %s111 = sphi 0, %s111
      %s113 = sphi 0, %s111
      %s114 = sphi 0, %s113
      %s128 = sphi 0, %s114
      %s136 = sphi 0, %s138
      %s139 = sphi 0, %s136
      %s140 = sphi 0, %s139
      %s156 = sphi 0, %s140
    $region4: #{tpu_custom_call.1} parent=1 // loop_header_branch
      %16 = sbr.rel (%p14) target = $region8
    $region5: #{tpu_custom_call.1} parent=1 // loop_body
      %s18 = ssub.s32 %s13, 1
      %s19 = ssub.s32 %s13, 2
      %s26 = sadd.s32 1, %s21
      %p27 = scmp.ge.s32.totalorder %s26, 1
      %s28 = scalar_select %p27, 0, %s26
      %s29 = sadd.s32 1, %s20
      %s30 = scalar_select %p27, %s29, %s20
      %p31 = scmp.ge.s32.totalorder %s30, 2
      %s32 = scalar_select %p31, 0, %s30
      %s33 = ssub.s32 %s20, %s32
      %p34 = scmp.eq.s32.totalorder %s33, 0
      %s36 = sadd.s32 %s35, 1
      %s37 = scalar_select %p34, %s35, %s36
      %p40 = pneg %p34
      %p41 = scmp.eq.s32.totalorder %s13, 1
      %p42 = por %p40, %p41
      %p43 = scmp.ne.s32.totalorder %s35, %s38
      %p44 = scmp.eq.s32.totalorder %s13, 0
      %p45 = por %p43, %p44
      %p46 = scmp.ne.s32.totalorder %s35, %s38
      %p47 = scmp.eq.s32.totalorder %s18, 1
      %p48 = por %p46, %p47
      %p49 = scmp.ne.s32.totalorder %s38, %s39
      %p50 = scmp.eq.s32.totalorder %s18, 0
      %p51 = por %p49, %p50
      %p52 = scmp.ne.s32.totalorder %s38, %s39
      %p53 = scmp.eq.s32.totalorder %s19, 1
      %p54 = por %p52, %p53
      %p56 = scmp.ne.s32.totalorder %s39, %s55
      %p57 = scmp.eq.s32.totalorder %s19, 0
      %p58 = por %p56, %p57
      %s59 = ssub.s32 %s21, %s28
      %p60 = scmp.eq.s32.totalorder %s59, 0
      %s62 = sadd.s32 %s61, 1
      %s63 = scalar_select %p60, %s61, %s62
      %p66 = pneg %p60
      %p67 = scmp.eq.s32.totalorder %s13, 1
      %p68 = por %p66, %p67
      %p69 = scmp.ne.s32.totalorder %s61, %s64
      %p70 = scmp.eq.s32.totalorder %s13, 0
      %p71 = por %p69, %p70
      %p72 = scmp.ne.s32.totalorder %s61, %s64
      %p73 = scmp.eq.s32.totalorder %s18, 1
      %p74 = por %p72, %p73
      %p75 = scmp.ne.s32.totalorder %s64, %s65
      %p76 = scmp.eq.s32.totalorder %s18, 0
      %p77 = por %p75, %p76
      %p78 = scmp.ne.s32.totalorder %s64, %s65
      %p79 = scmp.eq.s32.totalorder %s19, 1
      %p80 = por %p78, %p79
      %p82 = scmp.ne.s32.totalorder %s65, %s81
      %p83 = scmp.eq.s32.totalorder %s19, 0
      %p84 = por %p82, %p83
      %s85 = ssub.s32 %s21, %s28
      %p86 = scmp.eq.s32.totalorder %s85, 0
      %s88 = sadd.s32 %s87, 1
      %s89 = scalar_select %p86, %s87, %s88
      %p92 = pneg %p86
      %p93 = scmp.eq.s32.totalorder %s13, 1
      %p94 = por %p92, %p93
      %p95 = scmp.ne.s32.totalorder %s87, %s90
      %p96 = scmp.eq.s32.totalorder %s13, 0
      %p97 = por %p95, %p96
      %p98 = scmp.ne.s32.totalorder %s87, %s90
      %p99 = scmp.eq.s32.totalorder %s18, 1
      %p100 = por %p98, %p99
      %p101 = scmp.ne.s32.totalorder %s90, %s91
      %p102 = scmp.eq.s32.totalorder %s18, 0
      %p103 = por %p101, %p102
      %p104 = scmp.ne.s32.totalorder %s90, %s91
      %p105 = scmp.eq.s32.totalorder %s19, 1
      %p106 = por %p104, %p105
      %p108 = scmp.ne.s32.totalorder %s91, %s107
      %p109 = scmp.eq.s32.totalorder %s19, 0
      %p110 = por %p108, %p109
      %s112 = sadd.s32 %s111, 1
      %p115 = scmp.eq.s32.totalorder %s13, 1
      %p116 = scmp.ne.s32.totalorder %s111, %s113
      %p117 = scmp.eq.s32.totalorder %s13, 0
      %p118 = por %p116, %p117
      %p119 = scmp.ne.s32.totalorder %s111, %s113
      %p120 = scmp.eq.s32.totalorder %s18, 1
      %p121 = por %p119, %p120
      %p122 = scmp.ne.s32.totalorder %s113, %s114
      %p123 = scmp.eq.s32.totalorder %s18, 0
      %p124 = por %p122, %p123
      %p125 = scmp.ne.s32.totalorder %s113, %s114
      %p126 = scmp.eq.s32.totalorder %s19, 1
      %p127 = por %p125, %p126
      %p129 = scmp.ne.s32.totalorder %s114, %s128
      %p130 = scmp.eq.s32.totalorder %s19, 0
      %p131 = por %p129, %p130
      %s132 = ssub.s32 %s20, %s32
      %s133 = ssub.s32 %s21, %s28
      %s134 = sor.u32 %s132, %s133
      %p135 = scmp.eq.s32.totalorder %s134, 0
      %s137 = sadd.s32 %s136, 1
      %s138 = scalar_select %p135, %s136, %s137
      %p141 = pneg %p135
      %p142 = scmp.eq.s32.totalorder %s13, 1
      %p143 = por %p141, %p142
      %p144 = scmp.ne.s32.totalorder %s136, %s139
      %p145 = scmp.eq.s32.totalorder %s13, 0
      %p146 = por %p144, %p145
      %p147 = scmp.ne.s32.totalorder %s136, %s139
      %p148 = scmp.eq.s32.totalorder %s18, 1
      %p149 = por %p147, %p148
      %p150 = scmp.ne.s32.totalorder %s139, %s140
      %p151 = scmp.eq.s32.totalorder %s18, 0
      %p152 = por %p150, %p151
      %p153 = scmp.ne.s32.totalorder %s139, %s140
      %p154 = scmp.eq.s32.totalorder %s19, 1
      %p155 = por %p153, %p154
      %p157 = scmp.ne.s32.totalorder %s140, %s156
      %p158 = scmp.eq.s32.totalorder %s19, 0
      %p159 = por %p157, %p158
      %p160 = scmp.le.s32.totalorder 1, %s13
      %p161 = scmp.lt.s32.totalorder %s13, 3
      %p162 = pnand %p160, %p161
      %p163 = pneg %p162
      // Predicated region
      $region9: #{tpu_custom_call.1} parent=5 // pred_check
        _
      $region10: #{tpu_custom_call.1} parent=5 // pred_check_branch
        %165 = sbr.rel (%p162) target = $region12
      $region11: #{tpu_custom_call.1} parent=5 // pred_region
        %s166 = ssub.s32 %s13, 1
        // Predicated region
        $region13: #{tpu_custom_call.1} parent=11 // pred_check
          %p167 = pneg %p77
        $region14: #{tpu_custom_call.1} parent=11 // pred_check_branch
          %169 = sbr.rel (%p167) target = $region16
        $region15: #{tpu_custom_call.1} parent=11 // pred_region
          %s170 = smul.u32 8, %s23
          %p171 = scmp.lt.s32.totalorder %s170, 7
          %s172 = scalar_select %p171, %s170, 7
          %s173 = smul.addr %s172, 4
          %s174 = scalar_lea.vmem %s1, %s173
          %s175 = smul.u32 8, %s23
        $region16: #{tpu_custom_call.1} parent=11 // pred_fallthru
          _
        // Predicated region
        $region17: #{tpu_custom_call.1} parent=11 // pred_check
          %p176 = pneg %p103
        $region18: #{tpu_custom_call.1} parent=11 // pred_check_branch
          %178 = sbr.rel (%p176) target = $region20
        $region19: #{tpu_custom_call.1} parent=11 // pred_region
          %s179 = smul.u32 8, %s23
          %p180 = scmp.lt.s32.totalorder %s179, 7
          %s181 = scalar_select %p180, %s179, 7
          %s182 = smul.addr %s181, 8
          %s183 = scalar_lea.vmem %s2, %s182
          %s184 = smul.u32 8, %s23
        $region20: #{tpu_custom_call.1} parent=11 // pred_fallthru
          _
        // Predicated region
        $region21: #{tpu_custom_call.1} parent=11 // pred_check
          %p185 = pneg %p124
        $region22: #{tpu_custom_call.1} parent=11 // pred_check_branch
          %187 = sbr.rel (%p185) target = $region24
        $region23: #{tpu_custom_call.1} parent=11 // pred_region
          _
        $region24: #{tpu_custom_call.1} parent=11 // pred_fallthru
          _
      $region12: #{tpu_custom_call.1} parent=5 // pred_fallthru
        _
      %p188 = scmp.lt.s32.totalorder %s13, 2
      // Predicated region
      $region25: #{tpu_custom_call.1} parent=5 // pred_check
        %p189 = pneg %p188
      $region26: #{tpu_custom_call.1} parent=5 // pred_check_branch
        %191 = sbr.rel (%p189) target = $region28
      $region27: #{tpu_custom_call.1} parent=5 // pred_region
        // Predicated region
        $region29: #{tpu_custom_call.1} parent=27 // pred_check
          %p192 = pneg %p45
        $region30: #{tpu_custom_call.1} parent=27 // pred_check_branch
          %194 = sbr.rel (%p192) target = $region32
        $region31: #{tpu_custom_call.1} parent=27 // pred_region
          %p195 = scmp.lt.s32.totalorder %s20, 1
          %s196 = scalar_select %p195, %s20, 1
          %s197 = smul.addr %s196, 2
          %s198 = smul.addr %s197, 4
          %s199 = scalar_lea.vmem %s0, %s198
        $region32: #{tpu_custom_call.1} parent=27 // pred_fallthru
          _
      $region28: #{tpu_custom_call.1} parent=5 // pred_fallthru
        _
      %p200 = scmp.le.s32.totalorder 1, %s13
      %p201 = scmp.lt.s32.totalorder %s13, 3
      %p202 = pnand %p200, %p201
      %p203 = pneg %p202
      // Predicated region
      $region33: #{tpu_custom_call.1} parent=5 // pred_check
        _
      $region34: #{tpu_custom_call.1} parent=5 // pred_check_branch
        %205 = sbr.rel (%p202) target = $region36
      $region35: #{tpu_custom_call.1} parent=5 // pred_region
        %s206 = ssub.s32 %s13, 1
        %p207 = scmp.lt.s32.totalorder %s22, 1
        %s208 = scalar_select %p207, %s22, 1
        %s209 = smul.addr %s208, 2
        %s210 = smul.addr %s209, 4
        %s211 = scalar_lea.vmem %s0, %s210
        %p212 = pneg %p51
        %p213 = pneg %p48
        %s214 = smul.u32 8, %s23
        %p215 = scmp.lt.s32.totalorder %s214, 7
        %s216 = scalar_select %p215, %s214, 7
        %s217 = smul.addr %s216, 4
        %s218 = scalar_lea.vmem %s1, %s217
        %p219 = pneg %p77
        %p220 = pneg %p74
        %s221 = smul.u32 8, %s23
        %p222 = scmp.lt.s32.totalorder %s221, 7
        %s223 = scalar_select %p222, %s221, 7
        %s224 = smul.addr %s223, 8
        %s225 = scalar_lea.vmem %s2, %s224
        %p226 = pneg %p103
        %p227 = pneg %p100
        %p228 = pneg %p124
        %p229 = pneg %p121
        %p230 = pneg %p152
        %p231 = pneg %p149
        %s232 = sand.u32 %s139, 1
        %s233 = scalar_lea.sflag [#allocation3], %s232
        %s234 = sand.u32 %s139, 1
        %s235 = smul.addr %s234, 64
        %s236 = scalar_lea.vmem [#allocation2], %s235
        %p237 = scmp.lt.s32.totalorder %s22, 1
        %s238 = scalar_select %p237, %s22, 1
        %s239 = smul.addr %s238, 2
        %s240 = smul.addr %s239, 4
        %s241 = scalar_lea.vmem %s0, %s240
        %s242 = smul.u32 8, %s23
        %p243 = scmp.lt.s32.totalorder %s242, 7
        %s244 = scalar_select %p243, %s242, 7
        %s245 = smul.addr %s244, 4
        %s246 = scalar_lea.vmem %s1, %s245
        %s247 = smul.u32 8, %s23
        %s248 = smul.u32 8, %s23
        %p249 = scmp.lt.s32.totalorder %s248, 7
        %s250 = scalar_select %p249, %s248, 7
        %s251 = smul.addr %s250, 8
        %s252 = scalar_lea.vmem %s2, %s251
        %s253 = smul.u32 8, %s23
        %s254 = smul.u32 8, %s23
        %v256 = vld [vmem:[%s241] sm:$0xff]
        %v257 = vld [vmem:[%s3] sm:$0xff]
        %v258 = vld [vmem:[%s246] sm:$0xf]
        %v259 = vld [vmem:[%s246 + $0x4] sm:$0xf]
        %v260 = vld [vmem:[%s246 + $0x8] sm:$0xf]
        %v261 = vld [vmem:[%s246 + $0xc] sm:$0xf]
        %v262 = vld [vmem:[%s246 + $0x10] sm:$0xf]
        %v263 = vld [vmem:[%s246 + $0x14] sm:$0xf]
        %v264 = vld [vmem:[%s246 + $0x18] sm:$0xf]
        %v265 = vld [vmem:[%s246 + $0x1c] sm:$0xf]
        %v267 = vcombine.high %v256, %v256
        %v269 = vpack.c.bf16 %v256, %v256
        %v270 = vpack.c.bf16 %v267, %v267
        %271 = vrot.lane.b32.xlu0 %v256, 127
        %v272 = vpop.permute.xlu0 %271
        %273 = vrot.lane.b32.xlu0 %v267, 127
        %v274 = vpop.permute.xlu0 %273
        %v275 = vlaneseq
        %v276 = vand.u32 %v275, 127
        %vm277 = vcmp.lt.s32.totalorder %v276, 127
        %v278 = vsel %vm277, %v272, %v274
        %v279 = vsel %vm277, %v274, %v272
        %v281 = vlaneseq
        %v282 = vshrl.u32 %v281, 7
        %v283 = vsub.s32 0, %v282
        %v284 = vrot.slane %v257, %v283
        %v285 = vlaneseq
        %v286 = vshrl.u32 %v285, 7
        %v287 = vsub.s32 4, %v286
        %v288 = vrot.slane %v257, %v287
        %v291 = vlaneseq
        %v292 = vshrl.u32 %v291, 7
        %v293 = vsub.s32 0, %v292
        %v294 = vrot.slane %v284, %v293
        %v295 = vlaneseq
        %v296 = vshrl.u32 %v295, 7
        %v297 = vsub.s32 0, %v296
        %v298 = vrot.slane %v288, %v297
        %v299 = vmul.f32 %v278, %v294
        %v300 = vmul.f32 %v279, %v298
        %s301 = scalar_lea.vmem %s246, 32
        %v302 = vld [vmem:[%s301] sm:$0xf]
        %v303 = vld [vmem:[%s301 + $0x4] sm:$0xf]
        %v304 = vld [vmem:[%s301 + $0x8] sm:$0xf]
        %v305 = vld [vmem:[%s301 + $0xc] sm:$0xf]
        %v306 = vld [vmem:[%s301 + $0x10] sm:$0xf]
        %v307 = vld [vmem:[%s301 + $0x14] sm:$0xf]
        %v308 = vld [vmem:[%s301 + $0x18] sm:$0xf]
        %v309 = vld [vmem:[%s301 + $0x1c] sm:$0xf]
        %v310 = vpack.c.bf16 %v299, %v299
        %v311 = vpack.c.bf16 %v300, %v300
        %v320 = vunpack.c.l.b16 %v302
        %v321 = vunpack.c.l.b16 %v303
        %v322 = vunpack.c.l.b16 %v304
        %v323 = vunpack.c.l.b16 %v305
        %v324 = vunpack.c.l.b16 %v306
        %v325 = vunpack.c.l.b16 %v307
        %v326 = vunpack.c.l.b16 %v308
        %v327 = vunpack.c.l.b16 %v309
        %v328 = vpack.c.b16 %v321, %v320
        %v329 = vpack.c.b16 %v323, %v322
        %v330 = vpack.c.b16 %v325, %v324
        %v331 = vpack.c.b16 %v327, %v326
        %vm332 = vcmask 31744
        %v334 = vsel %vm332, %v328, 0
        %v337 = vsel %vm332, %v329, 0
        %v340 = vsel %vm332, %v330, 0
        %v343 = vsel %vm332, %v331, 0
        %vm345 = vcmask 1041408
        %v347 = vsel %vm345, %v310, 0
        %v350 = vsel %vm345, %v311, 0
        %352 = vmatprep.subr.bf16.mxu0 %v350
        %353 = vmatpush1.bf16.msra.mxu0 %v347
        %354 = vmatprep.subr.bf16.mxu0 0
        %355 = vmatpush1.bf16.msra.mxu0 0
        %356 = vmatprep.subr.bf16.mxu0 0
        %357 = vmatpush1.bf16.msra.mxu0 0
        %358 = vmatprep.subr.bf16.mxu0 0
        %359 = vmatpush1.bf16.msra.mxu0 0
        %360 = vmatprep.subr.bf16.mxu0 0
        %361 = vmatpush1.bf16.msra.mxu0 0
        %362 = vmatprep.subr.bf16.mxu0 0
        %363 = vmatpush1.bf16.msra.mxu0 0
        %364 = vmatprep.subr.bf16.mxu0 0
        %365 = vmatpush1.bf16.msra.mxu0 0
        %366 = vmatprep.subr.bf16.mxu0 0
        %367 = vmatpush1.bf16.msra.mxu0 0
        %368 = vmatprep.subr.bf16.mxu0 0
        %369 = vmatpush1.bf16.msra.mxu0 0
        %370 = vmatprep.subr.bf16.mxu0 0
        %371 = vmatpush1.bf16.msra.mxu0 0
        %372 = vmatprep.subr.bf16.mxu0 0
        %373 = vmatpush1.bf16.msra.mxu0 0
        %374 = vmatprep.subr.bf16.mxu0 0
        %375 = vmatpush1.bf16.msra.mxu0 0
        %376 = vmatprep.subr.bf16.mxu0 0
        %377 = vmatpush1.bf16.msra.mxu0 0
        %378 = vmatprep.subr.bf16.mxu0 0
        %379 = vmatpush1.bf16.msra.mxu0 0
        %380 = vmatprep.subr.bf16.mxu0 0
        %381 = vmatpush1.bf16.msra.mxu0 0
        %382 = vmatprep.subr.bf16.mxu0 0
        %383 = vmatpush1.bf16.msra.mxu0 0
        %384 = vmatprep.mubr.bf16.mxu0 0
        %385 = vmatmul.mubr.bf16.gmra.mrb[0].mxu0 %v334
        %v386 = vpop.f32.mrb[0].mxu0
        %v387 = vadd.f32 0.0, %v386
        %v388 = vpop.f32.mrb[0].mxu0
        %v389 = vadd.f32 0.0, %v388
        %v390 = vpop.f32.mrb[0].mxu0
        %v391 = vadd.f32 0.0, %v390
        %v392 = vpop.f32.mrb[0].mxu0
        %v393 = vadd.f32 0.0, %v392
        %394 = vmatprep.mubr.bf16.mxu0 0
        %395 = vmatmul.mubr.bf16.gmra.mrb[0].mxu0 %v337
        %v396 = vpop.f32.mrb[0].mxu0
        %v397 = vadd.f32 0.0, %v396
        %v398 = vpop.f32.mrb[0].mxu0
        %v399 = vadd.f32 0.0, %v398
        %v400 = vpop.f32.mrb[0].mxu0
        %v401 = vadd.f32 0.0, %v400
        %v402 = vpop.f32.mrb[0].mxu0
        %v403 = vadd.f32 0.0, %v402
        %404 = vmatprep.mubr.bf16.mxu0 0
        %405 = vmatmul.mubr.bf16.gmra.mrb[0].mxu0 %v340
        %v406 = vpop.f32.mrb[0].mxu0
        %v407 = vadd.f32 0.0, %v406
        %v408 = vpop.f32.mrb[0].mxu0
        %v409 = vadd.f32 0.0, %v408
        %v410 = vpop.f32.mrb[0].mxu0
        %v411 = vadd.f32 0.0, %v410
        %v412 = vpop.f32.mrb[0].mxu0
        %v413 = vadd.f32 0.0, %v412
        %414 = vmatprep.mubr.bf16.mxu0 0
        %415 = vmatmul.mubr.bf16.gmra.mrb[0].mxu0 %v343
        %v416 = vpop.f32.mrb[0].mxu0
        %v417 = vadd.f32 0.0, %v416
        %v418 = vpop.f32.mrb[0].mxu0
        %v419 = vadd.f32 0.0, %v418
        %v420 = vpop.f32.mrb[0].mxu0
        %v421 = vadd.f32 0.0, %v420
        %v422 = vpop.f32.mrb[0].mxu0
        %v423 = vadd.f32 0.0, %v422
        %424 = vdwg.mxu0
        %v433 = vunpack.c.l.b16 %v258
        %v434 = vunpack.c.l.b16 %v259
        %v435 = vunpack.c.l.b16 %v260
        %v436 = vunpack.c.l.b16 %v261
        %v437 = vunpack.c.l.b16 %v262
        %v438 = vunpack.c.l.b16 %v263
        %v439 = vunpack.c.l.b16 %v264
        %v440 = vunpack.c.l.b16 %v265
        %v441 = vpack.c.b16 %v434, %v433
        %v442 = vpack.c.b16 %v436, %v435
        %v443 = vpack.c.b16 %v438, %v437
        %v444 = vpack.c.b16 %v440, %v439
        %v446 = vsel %vm332, %v441, 0
        %v449 = vsel %vm332, %v442, 0
        %v452 = vsel %vm332, %v443, 0
        %v455 = vsel %vm332, %v444, 0
        %v458 = vsel %vm345, %v269, 0
        %v461 = vsel %vm345, %v270, 0
        %463 = vmatprep.subr.bf16.mxu0 %v461
        %464 = vmatpush1.bf16.msra.mxu0 %v458
        %465 = vmatprep.subr.bf16.mxu0 0
        %466 = vmatpush1.bf16.msra.mxu0 0
        %467 = vmatprep.subr.bf16.mxu0 0
        %468 = vmatpush1.bf16.msra.mxu0 0
        %469 = vmatprep.subr.bf16.mxu0 0
        %470 = vmatpush1.bf16.msra.mxu0 0
        %471 = vmatprep.subr.bf16.mxu0 0
        %472 = vmatpush1.bf16.msra.mxu0 0
        %473 = vmatprep.subr.bf16.mxu0 0
        %474 = vmatpush1.bf16.msra.mxu0 0
        %475 = vmatprep.subr.bf16.mxu0 0
        %476 = vmatpush1.bf16.msra.mxu0 0
        %477 = vmatprep.subr.bf16.mxu0 0
        %478 = vmatpush1.bf16.msra.mxu0 0
        %479 = vmatprep.subr.bf16.mxu0 0
        %480 = vmatpush1.bf16.msra.mxu0 0
        %481 = vmatprep.subr.bf16.mxu0 0
        %482 = vmatpush1.bf16.msra.mxu0 0
        %483 = vmatprep.subr.bf16.mxu0 0
        %484 = vmatpush1.bf16.msra.mxu0 0
        %485 = vmatprep.subr.bf16.mxu0 0
        %486 = vmatpush1.bf16.msra.mxu0 0
        %487 = vmatprep.subr.bf16.mxu0 0
        %488 = vmatpush1.bf16.msra.mxu0 0
        %489 = vmatprep.subr.bf16.mxu0 0
        %490 = vmatpush1.bf16.msra.mxu0 0
        %491 = vmatprep.subr.bf16.mxu0 0
        %492 = vmatpush1.bf16.msra.mxu0 0
        %493 = vmatprep.subr.bf16.mxu0 0
        %494 = vmatpush1.bf16.msra.mxu0 0
        %495 = vmatprep.mubr.bf16.mxu0 0
        %496 = vmatmul.mubr.bf16.gmra.mrb[0].mxu0 %v446
        %v497 = vpop.f32.mrb[0].mxu0
        %v498 = vadd.f32 %v387, %v497
        %v499 = vpop.f32.mrb[0].mxu0
        %v500 = vadd.f32 %v389, %v499
        %v501 = vpop.f32.mrb[0].mxu0
        %v502 = vadd.f32 %v391, %v501
        %v503 = vpop.f32.mrb[0].mxu0
        %v504 = vadd.f32 %v393, %v503
        %505 = vmatprep.mubr.bf16.mxu0 0
        %506 = vmatmul.mubr.bf16.gmra.mrb[0].mxu0 %v449
        %v507 = vpop.f32.mrb[0].mxu0
        %v508 = vadd.f32 %v397, %v507
        %v509 = vpop.f32.mrb[0].mxu0
        %v510 = vadd.f32 %v399, %v509
        %v511 = vpop.f32.mrb[0].mxu0
        %v512 = vadd.f32 %v401, %v511
        %v513 = vpop.f32.mrb[0].mxu0
        %v514 = vadd.f32 %v403, %v513
        %515 = vmatprep.mubr.bf16.mxu0 0
        %516 = vmatmul.mubr.bf16.gmra.mrb[0].mxu0 %v452
        %v517 = vpop.f32.mrb[0].mxu0
        %v518 = vadd.f32 %v407, %v517
        %v519 = vpop.f32.mrb[0].mxu0
        %v520 = vadd.f32 %v409, %v519
        %v521 = vpop.f32.mrb[0].mxu0
        %v522 = vadd.f32 %v411, %v521
        %v523 = vpop.f32.mrb[0].mxu0
        %v524 = vadd.f32 %v413, %v523
        %525 = vmatprep.mubr.bf16.mxu0 0
        %526 = vmatmul.mubr.bf16.gmra.mrb[0].mxu0 %v455
        %v527 = vpop.f32.mrb[0].mxu0
        %v528 = vadd.f32 %v417, %v527
        %v529 = vpop.f32.mrb[0].mxu0
        %v530 = vadd.f32 %v419, %v529
        %v531 = vpop.f32.mrb[0].mxu0
        %v532 = vadd.f32 %v421, %v531
        %v533 = vpop.f32.mrb[0].mxu0
        %v534 = vadd.f32 %v423, %v533
        %535 = vdwg.mxu0
        %536 = vrot.lane.b32.xlu0 %v256, 112
        %v537 = vpop.permute.xlu0 %536
        %538 = vrot.lane.b32.xlu0 %v267, 112
        %v539 = vpop.permute.xlu0 %538
        %vm540 = vcmp.lt.s32.totalorder %v276, 112
        %v541 = vsel %vm540, %v537, %v539
        %v542 = vsel %vm540, %v539, %v537
        %v543 = vlaneseq
        %v544 = vshrl.u32 %v543, 7
        %v545 = vsub.s32 1, %v544
        %v546 = vrot.slane %v257, %v545
        %v547 = vlaneseq
        %v548 = vshrl.u32 %v547, 7
        %v549 = vsub.s32 5, %v548
        %v550 = vrot.slane %v257, %v549
        %v553 = vlaneseq
        %v554 = vshrl.u32 %v553, 7
        %v555 = vsub.s32 1, %v554
        %v556 = vrot.slane %v546, %v555
        %v557 = vlaneseq
        %v558 = vshrl.u32 %v557, 7
        %v559 = vsub.s32 1, %v558
        %v560 = vrot.slane %v550, %v559
        %v561 = vmul.f32 %v541, %v556
        %v562 = vmul.f32 %v542, %v560
        %s563 = scalar_lea.vmem %s246, 64
        %v564 = vld [vmem:[%s563] sm:$0xf]
        %v565 = vld [vmem:[%s563 + $0x4] sm:$0xf]
        %v566 = vld [vmem:[%s563 + $0x8] sm:$0xf]
        %v567 = vld [vmem:[%s563 + $0xc] sm:$0xf]
        %v568 = vld [vmem:[%s563 + $0x10] sm:$0xf]
        %v569 = vld [vmem:[%s563 + $0x14] sm:$0xf]
        %v570 = vld [vmem:[%s563 + $0x18] sm:$0xf]
        %v571 = vld [vmem:[%s563 + $0x1c] sm:$0xf]
        %v572 = vpack.c.bf16 %v561, %v561
        %v573 = vpack.c.bf16 %v562, %v562
        %v582 = vunpack.c.l.b16 %v564
        %v583 = vunpack.c.l.b16 %v565
        %v584 = vunpack.c.l.b16 %v566
        %v585 = vunpack.c.l.b16 %v567
        %v586 = vunpack.c.l.b16 %v568
        %v587 = vunpack.c.l.b16 %v569
        %v588 = vunpack.c.l.b16 %v570
        %v589 = vunpack.c.l.b16 %v571
        %v590 = vpack.c.b16 %v583, %v582
        %v591 = vpack.c.b16 %v585, %v584
        %v592 = vpack.c.b16 %v587, %v586
        %v593 = vpack.c.b16 %v589, %v588
        %v595 = vsel %vm332, %v590, 0
        %v598 = vsel %vm332, %v591, 0
        %v601 = vsel %vm332, %v592, 0
        %v604 = vsel %vm332, %v593, 0
        %v607 = vsel %vm345, %v572, 0
        %v610 = vsel %vm345, %v573, 0
        %612 = vmatprep.subr.bf16.mxu0 %v610
        %613 = vmatpush1.bf16.msra.mxu0 %v607
        %614 = vmatprep.subr.bf16.mxu0 0
        %615 = vmatpush1.bf16.msra.mxu0 0
        %616 = vmatprep.subr.bf16.mxu0 0
        %617 = vmatpush1.bf16.msra.mxu0 0
        %618 = vmatprep.subr.bf16.mxu0 0
        %619 = vmatpush1.bf16.msra.mxu0 0
        %620 = vmatprep.subr.bf16.mxu0 0
        %621 = vmatpush1.bf16.msra.mxu0 0
        %622 = vmatprep.subr.bf16.mxu0 0
        %623 = vmatpush1.bf16.msra.mxu0 0
        %624 = vmatprep.subr.bf16.mxu0 0
        %625 = vmatpush1.bf16.msra.mxu0 0
        %626 = vmatprep.subr.bf16.mxu0 0
        %627 = vmatpush1.bf16.msra.mxu0 0
        %628 = vmatprep.subr.bf16.mxu0 0
        %629 = vmatpush1.bf16.msra.mxu0 0
        %630 = vmatprep.subr.bf16.mxu0 0
        %631 = vmatpush1.bf16.msra.mxu0 0
        %632 = vmatprep.subr.bf16.mxu0 0
        %633 = vmatpush1.bf16.msra.mxu0 0
        %634 = vmatprep.subr.bf16.mxu0 0
        %635 = vmatpush1.bf16.msra.mxu0 0
        %636 = vmatprep.subr.bf16.mxu0 0
        %637 = vmatpush1.bf16.msra.mxu0 0
        %638 = vmatprep.subr.bf16.mxu0 0
        %639 = vmatpush1.bf16.msra.mxu0 0
        %640 = vmatprep.subr.bf16.mxu0 0
        %641 = vmatpush1.bf16.msra.mxu0 0
        %642 = vmatprep.subr.bf16.mxu0 0
        %643 = vmatpush1.bf16.msra.mxu0 0
        %644 = vmatprep.mubr.bf16.mxu0 0
        %645 = vmatmul.mubr.bf16.gmra.mrb[0].mxu0 %v595
        %v646 = vpop.f32.mrb[0].mxu0
        %v647 = vadd.f32 0.0, %v646
        %v648 = vpop.f32.mrb[0].mxu0
        %v649 = vadd.f32 0.0, %v648
        %v650 = vpop.f32.mrb[0].mxu0
        %v651 = vadd.f32 0.0, %v650
        %v652 = vpop.f32.mrb[0].mxu0
        %v653 = vadd.f32 0.0, %v652
        %654 = vmatprep.mubr.bf16.mxu0 0
        %655 = vmatmul.mubr.bf16.gmra.mrb[0].mxu0 %v598
        %v656 = vpop.f32.mrb[0].mxu0
        %v657 = vadd.f32 0.0, %v656
        %v658 = vpop.f32.mrb[0].mxu0
        %v659 = vadd.f32 0.0, %v658
        %v660 = vpop.f32.mrb[0].mxu0
        %v661 = vadd.f32 0.0, %v660
        %v662 = vpop.f32.mrb[0].mxu0
        %v663 = vadd.f32 0.0, %v662
        %664 = vmatprep.mubr.bf16.mxu0 0
        %665 = vmatmul.mubr.bf16.gmra.mrb[0].mxu0 %v601
        %v666 = vpop.f32.mrb[0].mxu0
        %v667 = vadd.f32 0.0, %v666
        %v668 = vpop.f32.mrb[0].mxu0
        %v669 = vadd.f32 0.0, %v668
        %v670 = vpop.f32.mrb[0].mxu0
        %v671 = vadd.f32 0.0, %v670
        %v672 = vpop.f32.mrb[0].mxu0
        %v673 = vadd.f32 0.0, %v672
        %674 = vmatprep.mubr.bf16.mxu0 0
        %675 = vmatmul.mubr.bf16.gmra.mrb[0].mxu0 %v604
        %v676 = vpop.f32.mrb[0].mxu0
        %v677 = vadd.f32 0.0, %v676
        %v678 = vpop.f32.mrb[0].mxu0
        %v679 = vadd.f32 0.0, %v678
        %v680 = vpop.f32.mrb[0].mxu0
        %v681 = vadd.f32 0.0, %v680
        %v682 = vpop.f32.mrb[0].mxu0
        %v683 = vadd.f32 0.0, %v682
        %684 = vdwg.mxu0
        %v685 = vadd.f32 %v498, %v647
        %v686 = vadd.f32 %v500, %v649
        %v687 = vadd.f32 %v502, %v651
        %v688 = vadd.f32 %v504, %v653
        %v689 = vadd.f32 %v508, %v657
        %v690 = vadd.f32 %v510, %v659
        %v691 = vadd.f32 %v512, %v661
        %v692 = vadd.f32 %v514, %v663
        %v693 = vadd.f32 %v518, %v667
        %v694 = vadd.f32 %v520, %v669
        %v695 = vadd.f32 %v522, %v671
        %v696 = vadd.f32 %v524, %v673
        %v697 = vadd.f32 %v528, %v677
        %v698 = vadd.f32 %v530, %v679
        %v699 = vadd.f32 %v532, %v681
        %v700 = vadd.f32 %v534, %v683
        %701 = vrot.lane.b32.xlu0 %v256, 111
        %v702 = vpop.permute.xlu0 %701
        %703 = vrot.lane.b32.xlu0 %v267, 111
        %v704 = vpop.permute.xlu0 %703
        %vm705 = vcmp.lt.s32.totalorder %v276, 111
        %v706 = vsel %vm705, %v702, %v704
        %v707 = vsel %vm705, %v704, %v702
        %v708 = vlaneseq
        %v709 = vshrl.u32 %v708, 7
        %v710 = vsub.s32 2, %v709
        %v711 = vrot.slane %v257, %v710
        %v712 = vlaneseq
        %v713 = vshrl.u32 %v712, 7
        %v714 = vsub.s32 6, %v713
        %v715 = vrot.slane %v257, %v714
        %v718 = vlaneseq
        %v719 = vshrl.u32 %v718, 7
        %v720 = vsub.s32 2, %v719
        %v721 = vrot.slane %v711, %v720
        %v722 = vlaneseq
        %v723 = vshrl.u32 %v722, 7
        %v724 = vsub.s32 2, %v723
        %v725 = vrot.slane %v715, %v724
        %v726 = vmul.f32 %v706, %v721
        %v727 = vmul.f32 %v707, %v725
        %s728 = scalar_lea.vmem %s246, 96
        %v729 = vld [vmem:[%s728] sm:$0xf]
        %v730 = vld [vmem:[%s728 + $0x4] sm:$0xf]
        %v731 = vld [vmem:[%s728 + $0x8] sm:$0xf]
        %v732 = vld [vmem:[%s728 + $0xc] sm:$0xf]
        %v733 = vld [vmem:[%s728 + $0x10] sm:$0xf]
        %v734 = vld [vmem:[%s728 + $0x14] sm:$0xf]
        %v735 = vld [vmem:[%s728 + $0x18] sm:$0xf]
        %v736 = vld [vmem:[%s728 + $0x1c] sm:$0xf]
        %v737 = vpack.c.bf16 %v726, %v726
        %v738 = vpack.c.bf16 %v727, %v727
        %v747 = vunpack.c.l.b16 %v729
        %v748 = vunpack.c.l.b16 %v730
        %v749 = vunpack.c.l.b16 %v731
        %v750 = vunpack.c.l.b16 %v732
        %v751 = vunpack.c.l.b16 %v733
        %v752 = vunpack.c.l.b16 %v734
        %v753 = vunpack.c.l.b16 %v735
        %v754 = vunpack.c.l.b16 %v736
        %v755 = vpack.c.b16 %v748, %v747
        %v756 = vpack.c.b16 %v750, %v749
        %v757 = vpack.c.b16 %v752, %v751
        %v758 = vpack.c.b16 %v754, %v753
        %v760 = vsel %vm332, %v755, 0
        %v763 = vsel %vm332, %v756, 0
        %v766 = vsel %vm332, %v757, 0
        %v769 = vsel %vm332, %v758, 0
        %v772 = vsel %vm345, %v737, 0
        %v775 = vsel %vm345, %v738, 0
        %777 = vmatprep.subr.bf16.mxu0 %v775
        %778 = vmatpush1.bf16.msra.mxu0 %v772
        %779 = vmatprep.subr.bf16.mxu0 0
        %780 = vmatpush1.bf16.msra.mxu0 0
        %781 = vmatprep.subr.bf16.mxu0 0
        %782 = vmatpush1.bf16.msra.mxu0 0
        %783 = vmatprep.subr.bf16.mxu0 0
        %784 = vmatpush1.bf16.msra.mxu0 0
        %785 = vmatprep.subr.bf16.mxu0 0
        %786 = vmatpush1.bf16.msra.mxu0 0
        %787 = vmatprep.subr.bf16.mxu0 0
        %788 = vmatpush1.bf16.msra.mxu0 0
        %789 = vmatprep.subr.bf16.mxu0 0
        %790 = vmatpush1.bf16.msra.mxu0 0
        %791 = vmatprep.subr.bf16.mxu0 0
        %792 = vmatpush1.bf16.msra.mxu0 0
        %793 = vmatprep.subr.bf16.mxu0 0
        %794 = vmatpush1.bf16.msra.mxu0 0
        %795 = vmatprep.subr.bf16.mxu0 0
        %796 = vmatpush1.bf16.msra.mxu0 0
        %797 = vmatprep.subr.bf16.mxu0 0
        %798 = vmatpush1.bf16.msra.mxu0 0
        %799 = vmatprep.subr.bf16.mxu0 0
        %800 = vmatpush1.bf16.msra.mxu0 0
        %801 = vmatprep.subr.bf16.mxu0 0
        %802 = vmatpush1.bf16.msra.mxu0 0
        %803 = vmatprep.subr.bf16.mxu0 0
        %804 = vmatpush1.bf16.msra.mxu0 0
        %805 = vmatprep.subr.bf16.mxu0 0
        %806 = vmatpush1.bf16.msra.mxu0 0
        %807 = vmatprep.subr.bf16.mxu0 0
        %808 = vmatpush1.bf16.msra.mxu0 0
        %809 = vmatprep.mubr.bf16.mxu0 0
        %810 = vmatmul.mubr.bf16.gmra.mrb[0].mxu0 %v760
        %v811 = vpop.f32.mrb[0].mxu0
        %v812 = vadd.f32 0.0, %v811
        %v813 = vpop.f32.mrb[0].mxu0
        %v814 = vadd.f32 0.0, %v813
        %v815 = vpop.f32.mrb[0].mxu0
        %v816 = vadd.f32 0.0, %v815
        %v817 = vpop.f32.mrb[0].mxu0
        %v818 = vadd.f32 0.0, %v817
        %819 = vmatprep.mubr.bf16.mxu0 0
        %820 = vmatmul.mubr.bf16.gmra.mrb[0].mxu0 %v763
        %v821 = vpop.f32.mrb[0].mxu0
        %v822 = vadd.f32 0.0, %v821
        %v823 = vpop.f32.mrb[0].mxu0
        %v824 = vadd.f32 0.0, %v823
        %v825 = vpop.f32.mrb[0].mxu0
        %v826 = vadd.f32 0.0, %v825
        %v827 = vpop.f32.mrb[0].mxu0
        %v828 = vadd.f32 0.0, %v827
        %829 = vmatprep.mubr.bf16.mxu0 0
        %830 = vmatmul.mubr.bf16.gmra.mrb[0].mxu0 %v766
        %v831 = vpop.f32.mrb[0].mxu0
        %v832 = vadd.f32 0.0, %v831
        %v833 = vpop.f32.mrb[0].mxu0
        %v834 = vadd.f32 0.0, %v833
        %v835 = vpop.f32.mrb[0].mxu0
        %v836 = vadd.f32 0.0, %v835
        %v837 = vpop.f32.mrb[0].mxu0
        %v838 = vadd.f32 0.0, %v837
        %839 = vmatprep.mubr.bf16.mxu0 0
        %840 = vmatmul.mubr.bf16.gmra.mrb[0].mxu0 %v769
        %v841 = vpop.f32.mrb[0].mxu0
        %v842 = vadd.f32 0.0, %v841
        %v843 = vpop.f32.mrb[0].mxu0
        %v844 = vadd.f32 0.0, %v843
        %v845 = vpop.f32.mrb[0].mxu0
        %v846 = vadd.f32 0.0, %v845
        %v847 = vpop.f32.mrb[0].mxu0
        %v848 = vadd.f32 0.0, %v847
        %849 = vdwg.mxu0
        %v850 = vadd.f32 %v685, %v812
        %v851 = vadd.f32 %v686, %v814
        %v852 = vadd.f32 %v687, %v816
        %v853 = vadd.f32 %v688, %v818
        %v854 = vadd.f32 %v689, %v822
        %v855 = vadd.f32 %v690, %v824
        %v856 = vadd.f32 %v691, %v826
        %v857 = vadd.f32 %v692, %v828
        %v858 = vadd.f32 %v693, %v832
        %v859 = vadd.f32 %v694, %v834
        %v860 = vadd.f32 %v695, %v836
        %v861 = vadd.f32 %v696, %v838
        %v862 = vadd.f32 %v697, %v842
        %v863 = vadd.f32 %v698, %v844
        %v864 = vadd.f32 %v699, %v846
        %v865 = vadd.f32 %v700, %v848
        %v866 = vld [vmem:[%s252] sm:$0xff]
        %v867 = vld [vmem:[%s252 + $0x8] sm:$0xff]
        %v868 = vld [vmem:[%s252 + $0x10] sm:$0xff]
        %v869 = vld [vmem:[%s252 + $0x18] sm:$0xff]
        %v870 = vld [vmem:[%s252 + $0x20] sm:$0xff]
        %v871 = vld [vmem:[%s252 + $0x28] sm:$0xff]
        %v872 = vld [vmem:[%s252 + $0x30] sm:$0xff]
        %v873 = vld [vmem:[%s252 + $0x38] sm:$0xff]
        %875 = vset.pattern.permute.xlu0 0
        %876 = vperm.xlu0 %875, %v866
        %v877 = vpop.permute.xlu0 %876
        %880 = vset.pattern.permute.xlu0 0
        %881 = vperm.xlu0 %880, %v867
        %v882 = vpop.permute.xlu0 %881
        %885 = vset.pattern.permute.xlu0 0
        %886 = vperm.xlu0 %885, %v868
        %v887 = vpop.permute.xlu0 %886
        %890 = vset.pattern.permute.xlu0 0
        %891 = vperm.xlu0 %890, %v869
        %v892 = vpop.permute.xlu0 %891
        %895 = vset.pattern.permute.xlu0 0
        %896 = vperm.xlu0 %895, %v870
        %v897 = vpop.permute.xlu0 %896
        %900 = vset.pattern.permute.xlu0 0
        %901 = vperm.xlu0 %900, %v871
        %v902 = vpop.permute.xlu0 %901
        %905 = vset.pattern.permute.xlu0 0
        %906 = vperm.xlu0 %905, %v872
        %v907 = vpop.permute.xlu0 %906
        %910 = vset.pattern.permute.xlu0 0
        %911 = vperm.xlu0 %910, %v873
        %v912 = vpop.permute.xlu0 %911
        %v914 = vadd.f32 %v850, %v877
        %v915 = vadd.f32 %v851, %v877
        %v916 = vadd.f32 %v852, %v882
        %v917 = vadd.f32 %v853, %v882
        %v918 = vadd.f32 %v854, %v887
        %v919 = vadd.f32 %v855, %v887
        %v920 = vadd.f32 %v856, %v892
        %v921 = vadd.f32 %v857, %v892
        %v922 = vadd.f32 %v858, %v897
        %v923 = vadd.f32 %v859, %v897
        %v924 = vadd.f32 %v860, %v902
        %v925 = vadd.f32 %v861, %v902
        %v926 = vadd.f32 %v862, %v907
        %v927 = vadd.f32 %v863, %v907
        %v928 = vadd.f32 %v864, %v912
        %v929 = vadd.f32 %v865, %v912
        %v930 = vadd.f32 %v914, %v915
        %931 = vadd.xlane.f32.xlu0 %v930
        %v932 = vpop.xlane.xlu0 %931
        %v933 = vadd.f32 %v916, %v917
        %934 = vadd.xlane.f32.xlu0 %v933
        %v935 = vpop.xlane.xlu0 %934
        %v936 = vadd.f32 %v918, %v919
        %937 = vadd.xlane.f32.xlu0 %v936
        %v938 = vpop.xlane.xlu0 %937
        %v939 = vadd.f32 %v920, %v921
        %940 = vadd.xlane.f32.xlu0 %v939
        %v941 = vpop.xlane.xlu0 %940
        %v942 = vadd.f32 %v922, %v923
        %943 = vadd.xlane.f32.xlu0 %v942
        %v944 = vpop.xlane.xlu0 %943
        %v945 = vadd.f32 %v924, %v925
        %946 = vadd.xlane.f32.xlu0 %v945
        %v947 = vpop.xlane.xlu0 %946
        %v948 = vadd.f32 %v926, %v927
        %949 = vadd.xlane.f32.xlu0 %v948
        %v950 = vpop.xlane.xlu0 %949
        %v951 = vadd.f32 %v928, %v929
        %952 = vadd.xlane.f32.xlu0 %v951
        %v953 = vpop.xlane.xlu0 %952
        %v954 = vmul.f32 %v914, %v914
        %v955 = vmul.f32 %v915, %v915
        %v956 = vmul.f32 %v916, %v916
        %v957 = vmul.f32 %v917, %v917
        %v958 = vmul.f32 %v918, %v918
        %v959 = vmul.f32 %v919, %v919
        %v960 = vmul.f32 %v920, %v920
        %v961 = vmul.f32 %v921, %v921
        %v962 = vmul.f32 %v922, %v922
        %v963 = vmul.f32 %v923, %v923
        %v964 = vmul.f32 %v924, %v924
        %v965 = vmul.f32 %v925, %v925
        %v966 = vmul.f32 %v926, %v926
        %v967 = vmul.f32 %v927, %v927
        %v968 = vmul.f32 %v928, %v928
        %v969 = vmul.f32 %v929, %v929
        %v970 = vadd.f32 %v954, %v955
        %971 = vadd.xlane.f32.xlu0 %v970
        %v972 = vpop.xlane.xlu0 %971
        %v973 = vadd.f32 %v956, %v957
        %974 = vadd.xlane.f32.xlu0 %v973
        %v975 = vpop.xlane.xlu0 %974
        %v976 = vadd.f32 %v958, %v959
        %977 = vadd.xlane.f32.xlu0 %v976
        %v978 = vpop.xlane.xlu0 %977
        %v979 = vadd.f32 %v960, %v961
        %980 = vadd.xlane.f32.xlu0 %v979
        %v981 = vpop.xlane.xlu0 %980
        %v982 = vadd.f32 %v962, %v963
        %983 = vadd.xlane.f32.xlu0 %v982
        %v984 = vpop.xlane.xlu0 %983
        %v985 = vadd.f32 %v964, %v965
        %986 = vadd.xlane.f32.xlu0 %v985
        %v987 = vpop.xlane.xlu0 %986
        %v988 = vadd.f32 %v966, %v967
        %989 = vadd.xlane.f32.xlu0 %v988
        %v990 = vpop.xlane.xlu0 %989
        %v991 = vadd.f32 %v968, %v969
        %992 = vadd.xlane.f32.xlu0 %v991
        %v993 = vpop.xlane.xlu0 %992
        %v994 = vrot.slane %v932, 4
        %v995 = vadd.f32 %v932, %v994
        %v996 = vrot.slane %v995, 2
        %v997 = vadd.f32 %v995, %v996
        %v998 = vrot.slane %v997, 1
        %v999 = vadd.f32 %v997, %v998
        %v1000 = vrot.slane %v972, 4
        %v1001 = vadd.f32 %v972, %v1000
        %v1002 = vrot.slane %v1001, 2
        %v1003 = vadd.f32 %v1001, %v1002
        %v1004 = vrot.slane %v1003, 1
        %v1005 = vadd.f32 %v1003, %v1004
        %v1006 = vrcp.pop 2048.0
        %v1007 = vmul.f32 %v999, %v1006
        %v1008 = vmul.f32 %v1005, %v1006
        %v1009 = vmul.f32 %v1007, %v1007
        %v1010 = vsub.f32 %v1008, %v1009
        %v1011 = vadd.f32 %v1010, 1e-05
        %v1012 = vrsqrt.pop %v1011
        %v1013 = vadd.f32 %v1012, 0.0
        %v1014 = vsub.f32 0.0, %v1007
        %v1015 = vmul.f32 %v1014, %v1012
        %v1016 = vadd.f32 %v1015, 0.0
        %v1017 = vrot.slane %v935, 4
        %v1018 = vadd.f32 %v935, %v1017
        %v1019 = vrot.slane %v1018, 2
        %v1020 = vadd.f32 %v1018, %v1019
        %v1021 = vrot.slane %v1020, 1
        %v1022 = vadd.f32 %v1020, %v1021
        %v1023 = vrot.slane %v975, 4
        %v1024 = vadd.f32 %v975, %v1023
        %v1025 = vrot.slane %v1024, 2
        %v1026 = vadd.f32 %v1024, %v1025
        %v1027 = vrot.slane %v1026, 1
        %v1028 = vadd.f32 %v1026, %v1027
        %v1029 = vmul.f32 %v1022, %v1006
        %v1030 = vmul.f32 %v1028, %v1006
        %v1031 = vmul.f32 %v1029, %v1029
        %v1032 = vsub.f32 %v1030, %v1031
        %v1033 = vadd.f32 %v1032, 1e-05
        %v1034 = vrsqrt.pop %v1033
        %v1035 = vadd.f32 %v1034, 0.0
        %v1036 = vsub.f32 0.0, %v1029
        %v1037 = vmul.f32 %v1036, %v1034
        %v1038 = vadd.f32 %v1037, 0.0
        %v1039 = vrot.slane %v938, 4
        %v1040 = vadd.f32 %v938, %v1039
        %v1041 = vrot.slane %v1040, 2
        %v1042 = vadd.f32 %v1040, %v1041
        %v1043 = vrot.slane %v1042, 1
        %v1044 = vadd.f32 %v1042, %v1043
        %v1045 = vrot.slane %v978, 4
        %v1046 = vadd.f32 %v978, %v1045
        %v1047 = vrot.slane %v1046, 2
        %v1048 = vadd.f32 %v1046, %v1047
        %v1049 = vrot.slane %v1048, 1
        %v1050 = vadd.f32 %v1048, %v1049
        %v1051 = vmul.f32 %v1044, %v1006
        %v1052 = vmul.f32 %v1050, %v1006
        %v1053 = vmul.f32 %v1051, %v1051
        %v1054 = vsub.f32 %v1052, %v1053
        %v1055 = vadd.f32 %v1054, 1e-05
        %v1056 = vrsqrt.pop %v1055
        %v1057 = vadd.f32 %v1056, 0.0
        %v1058 = vsub.f32 0.0, %v1051
        %v1059 = vmul.f32 %v1058, %v1056
        %v1060 = vadd.f32 %v1059, 0.0
        %v1061 = vrot.slane %v941, 4
        %v1062 = vadd.f32 %v941, %v1061
        %v1063 = vrot.slane %v1062, 2
        %v1064 = vadd.f32 %v1062, %v1063
        %v1065 = vrot.slane %v1064, 1
        %v1066 = vadd.f32 %v1064, %v1065
        %v1067 = vrot.slane %v981, 4
        %v1068 = vadd.f32 %v981, %v1067
        %v1069 = vrot.slane %v1068, 2
        %v1070 = vadd.f32 %v1068, %v1069
        %v1071 = vrot.slane %v1070, 1
        %v1072 = vadd.f32 %v1070, %v1071
        %v1073 = vmul.f32 %v1066, %v1006
        %v1074 = vmul.f32 %v1072, %v1006
        %v1075 = vmul.f32 %v1073, %v1073
        %v1076 = vsub.f32 %v1074, %v1075
        %v1077 = vadd.f32 %v1076, 1e-05
        %v1078 = vrsqrt.pop %v1077
        %v1079 = vadd.f32 %v1078, 0.0
        %v1080 = vsub.f32 0.0, %v1073
        %v1081 = vmul.f32 %v1080, %v1078
        %v1082 = vadd.f32 %v1081, 0.0
        %v1083 = vrot.slane %v944, 4
        %v1084 = vadd.f32 %v944, %v1083
        %v1085 = vrot.slane %v1084, 2
        %v1086 = vadd.f32 %v1084, %v1085
        %v1087 = vrot.slane %v1086, 1
        %v1088 = vadd.f32 %v1086, %v1087
        %v1089 = vrot.slane %v984, 4
        %v1090 = vadd.f32 %v984, %v1089
        %v1091 = vrot.slane %v1090, 2
        %v1092 = vadd.f32 %v1090, %v1091
        %v1093 = vrot.slane %v1092, 1
        %v1094 = vadd.f32 %v1092, %v1093
        %v1095 = vmul.f32 %v1088, %v1006
        %v1096 = vmul.f32 %v1094, %v1006
        %v1097 = vmul.f32 %v1095, %v1095
        %v1098 = vsub.f32 %v1096, %v1097
        %v1099 = vadd.f32 %v1098, 1e-05
        %v1100 = vrsqrt.pop %v1099
        %v1101 = vadd.f32 %v1100, 0.0
        %v1102 = vsub.f32 0.0, %v1095
        %v1103 = vmul.f32 %v1102, %v1100
        %v1104 = vadd.f32 %v1103, 0.0
        %v1105 = vrot.slane %v947, 4
        %v1106 = vadd.f32 %v947, %v1105
        %v1107 = vrot.slane %v1106, 2
        %v1108 = vadd.f32 %v1106, %v1107
        %v1109 = vrot.slane %v1108, 1
        %v1110 = vadd.f32 %v1108, %v1109
        %v1111 = vrot.slane %v987, 4
        %v1112 = vadd.f32 %v987, %v1111
        %v1113 = vrot.slane %v1112, 2
        %v1114 = vadd.f32 %v1112, %v1113
        %v1115 = vrot.slane %v1114, 1
        %v1116 = vadd.f32 %v1114, %v1115
        %v1117 = vmul.f32 %v1110, %v1006
        %v1118 = vmul.f32 %v1116, %v1006
        %v1119 = vmul.f32 %v1117, %v1117
        %v1120 = vsub.f32 %v1118, %v1119
        %v1121 = vadd.f32 %v1120, 1e-05
        %v1122 = vrsqrt.pop %v1121
        %v1123 = vadd.f32 %v1122, 0.0
        %v1124 = vsub.f32 0.0, %v1117
        %v1125 = vmul.f32 %v1124, %v1122
        %v1126 = vadd.f32 %v1125, 0.0
        %v1127 = vrot.slane %v950, 4
        %v1128 = vadd.f32 %v950, %v1127
        %v1129 = vrot.slane %v1128, 2
        %v1130 = vadd.f32 %v1128, %v1129
        %v1131 = vrot.slane %v1130, 1
        %v1132 = vadd.f32 %v1130, %v1131
        %v1133 = vrot.slane %v990, 4
        %v1134 = vadd.f32 %v990, %v1133
        %v1135 = vrot.slane %v1134, 2
        %v1136 = vadd.f32 %v1134, %v1135
        %v1137 = vrot.slane %v1136, 1
        %v1138 = vadd.f32 %v1136, %v1137
        %v1139 = vmul.f32 %v1132, %v1006
        %v1140 = vmul.f32 %v1138, %v1006
        %v1141 = vmul.f32 %v1139, %v1139
        %v1142 = vsub.f32 %v1140, %v1141
        %v1143 = vadd.f32 %v1142, 1e-05
        %v1144 = vrsqrt.pop %v1143
        %v1145 = vadd.f32 %v1144, 0.0
        %v1146 = vsub.f32 0.0, %v1139
        %v1147 = vmul.f32 %v1146, %v1144
        %v1148 = vadd.f32 %v1147, 0.0
        %v1149 = vrot.slane %v953, 4
        %v1150 = vadd.f32 %v953, %v1149
        %v1151 = vrot.slane %v1150, 2
        %v1152 = vadd.f32 %v1150, %v1151
        %v1153 = vrot.slane %v1152, 1
        %v1154 = vadd.f32 %v1152, %v1153
        %v1155 = vrot.slane %v993, 4
        %v1156 = vadd.f32 %v993, %v1155
        %v1157 = vrot.slane %v1156, 2
        %v1158 = vadd.f32 %v1156, %v1157
        %v1159 = vrot.slane %v1158, 1
        %v1160 = vadd.f32 %v1158, %v1159
        %v1161 = vmul.f32 %v1154, %v1006
        %v1162 = vmul.f32 %v1160, %v1006
        %v1163 = vmul.f32 %v1161, %v1161
        %v1164 = vsub.f32 %v1162, %v1163
        %v1165 = vadd.f32 %v1164, 1e-05
        %v1166 = vrsqrt.pop %v1165
        %v1167 = vadd.f32 %v1166, 0.0
        %v1168 = vsub.f32 0.0, %v1161
        %v1169 = vmul.f32 %v1168, %v1166
        %v1170 = vadd.f32 %v1169, 0.0
        %s1171 = scalar_lea.vmem %s252, 64
        %v1172 = vld [vmem:[%s1171] sm:$0xff]
        %v1173 = vld [vmem:[%s1171 + $0x8] sm:$0xff]
        %v1174 = vld [vmem:[%s1171 + $0x10] sm:$0xff]
        %v1175 = vld [vmem:[%s1171 + $0x18] sm:$0xff]
        %v1176 = vld [vmem:[%s1171 + $0x20] sm:$0xff]
        %v1177 = vld [vmem:[%s1171 + $0x28] sm:$0xff]
        %v1178 = vld [vmem:[%s1171 + $0x30] sm:$0xff]
        %v1179 = vld [vmem:[%s1171 + $0x38] sm:$0xff]
        %v1180 = vmul.f32 %v1172, %v1013
        %v1181 = vmul.f32 %v1173, %v1035
        %v1182 = vmul.f32 %v1174, %v1057
        %v1183 = vmul.f32 %v1175, %v1079
        %v1184 = vmul.f32 %v1176, %v1101
        %v1185 = vmul.f32 %v1177, %v1123
        %v1186 = vmul.f32 %v1178, %v1145
        %v1187 = vmul.f32 %v1179, %v1167
        %v1188 = vmul.f32 %v1172, %v1016
        %v1189 = vmul.f32 %v1173, %v1038
        %v1190 = vmul.f32 %v1174, %v1060
        %v1191 = vmul.f32 %v1175, %v1082
        %v1192 = vmul.f32 %v1176, %v1104
        %v1193 = vmul.f32 %v1177, %v1126
        %v1194 = vmul.f32 %v1178, %v1148
        %v1195 = vmul.f32 %v1179, %v1170
        %s1196 = scalar_lea.vmem %s252, 128
        %v1197 = vld [vmem:[%s1196] sm:$0xff]
        %v1198 = vld [vmem:[%s1196 + $0x8] sm:$0xff]
        %v1199 = vld [vmem:[%s1196 + $0x10] sm:$0xff]
        %v1200 = vld [vmem:[%s1196 + $0x18] sm:$0xff]
        %v1201 = vld [vmem:[%s1196 + $0x20] sm:$0xff]
        %v1202 = vld [vmem:[%s1196 + $0x28] sm:$0xff]
        %v1203 = vld [vmem:[%s1196 + $0x30] sm:$0xff]
        %v1204 = vld [vmem:[%s1196 + $0x38] sm:$0xff]
        %v1205 = vadd.f32 %v1188, %v1197
        %v1206 = vadd.f32 %v1189, %v1198
        %v1207 = vadd.f32 %v1190, %v1199
        %v1208 = vadd.f32 %v1191, %v1200
        %v1209 = vadd.f32 %v1192, %v1201
        %v1210 = vadd.f32 %v1193, %v1202
        %v1211 = vadd.f32 %v1194, %v1203
        %v1212 = vadd.f32 %v1195, %v1204
        %1214 = vset.pattern.permute.xlu0 0
        %1215 = vperm.xlu0 %1214, %v1180
        %v1216 = vpop.permute.xlu0 %1215
        %1219 = vset.pattern.permute.xlu0 0
        %1220 = vperm.xlu0 %1219, %v1181
        %v1221 = vpop.permute.xlu0 %1220
        %1224 = vset.pattern.permute.xlu0 0
        %1225 = vperm.xlu0 %1224, %v1182
        %v1226 = vpop.permute.xlu0 %1225
        %1229 = vset.pattern.permute.xlu0 0
        %1230 = vperm.xlu0 %1229, %v1183
        %v1231 = vpop.permute.xlu0 %1230
        %1234 = vset.pattern.permute.xlu0 0
        %1235 = vperm.xlu0 %1234, %v1184
        %v1236 = vpop.permute.xlu0 %1235
        %1239 = vset.pattern.permute.xlu0 0
        %1240 = vperm.xlu0 %1239, %v1185
        %v1241 = vpop.permute.xlu0 %1240
        %1244 = vset.pattern.permute.xlu0 0
        %1245 = vperm.xlu0 %1244, %v1186
        %v1246 = vpop.permute.xlu0 %1245
        %1249 = vset.pattern.permute.xlu0 0
        %1250 = vperm.xlu0 %1249, %v1187
        %v1251 = vpop.permute.xlu0 %1250
        %v1253 = vmul.f32 %v914, %v1216
        %v1254 = vmul.f32 %v915, %v1216
        %v1255 = vmul.f32 %v916, %v1221
        %v1256 = vmul.f32 %v917, %v1221
        %v1257 = vmul.f32 %v918, %v1226
        %v1258 = vmul.f32 %v919, %v1226
        %v1259 = vmul.f32 %v920, %v1231
        %v1260 = vmul.f32 %v921, %v1231
        %v1261 = vmul.f32 %v922, %v1236
        %v1262 = vmul.f32 %v923, %v1236
        %v1263 = vmul.f32 %v924, %v1241
        %v1264 = vmul.f32 %v925, %v1241
        %v1265 = vmul.f32 %v926, %v1246
        %v1266 = vmul.f32 %v927, %v1246
        %v1267 = vmul.f32 %v928, %v1251
        %v1268 = vmul.f32 %v929, %v1251
        %1270 = vset.pattern.permute.xlu0 0
        %1271 = vperm.xlu0 %1270, %v1205
        %v1272 = vpop.permute.xlu0 %1271
        %1275 = vset.pattern.permute.xlu0 0
        %1276 = vperm.xlu0 %1275, %v1206
        %v1277 = vpop.permute.xlu0 %1276
        %1280 = vset.pattern.permute.xlu0 0
        %1281 = vperm.xlu0 %1280, %v1207
        %v1282 = vpop.permute.xlu0 %1281
        %1285 = vset.pattern.permute.xlu0 0
        %1286 = vperm.xlu0 %1285, %v1208
        %v1287 = vpop.permute.xlu0 %1286
        %1290 = vset.pattern.permute.xlu0 0
        %1291 = vperm.xlu0 %1290, %v1209
        %v1292 = vpop.permute.xlu0 %1291
        %1295 = vset.pattern.permute.xlu0 0
        %1296 = vperm.xlu0 %1295, %v1210
        %v1297 = vpop.permute.xlu0 %1296
        %1300 = vset.pattern.permute.xlu0 0
        %1301 = vperm.xlu0 %1300, %v1211
        %v1302 = vpop.permute.xlu0 %1301
        %1305 = vset.pattern.permute.xlu0 0
        %1306 = vperm.xlu0 %1305, %v1212
        %v1307 = vpop.permute.xlu0 %1306
        %v1309 = vadd.f32 %v1253, %v1272
        %v1310 = vadd.f32 %v1254, %v1272
        %v1311 = vadd.f32 %v1255, %v1277
        %v1312 = vadd.f32 %v1256, %v1277
        %v1313 = vadd.f32 %v1257, %v1282
        %v1314 = vadd.f32 %v1258, %v1282
        %v1315 = vadd.f32 %v1259, %v1287
        %v1316 = vadd.f32 %v1260, %v1287
        %v1317 = vadd.f32 %v1261, %v1292
        %v1318 = vadd.f32 %v1262, %v1292
        %v1319 = vadd.f32 %v1263, %v1297
        %v1320 = vadd.f32 %v1264, %v1297
        %v1321 = vadd.f32 %v1265, %v1302
        %v1322 = vadd.f32 %v1266, %v1302
        %v1323 = vadd.f32 %v1267, %v1307
        %v1324 = vadd.f32 %v1268, %v1307
        %v1325 = vmax.f32 %v1309, 0.0
        %v1326 = vmax.f32 %v1310, 0.0
        %v1327 = vmax.f32 %v1311, 0.0
        %v1328 = vmax.f32 %v1312, 0.0
        %v1329 = vmax.f32 %v1313, 0.0
        %v1330 = vmax.f32 %v1314, 0.0
        %v1331 = vmax.f32 %v1315, 0.0
        %v1332 = vmax.f32 %v1316, 0.0
        %v1333 = vmax.f32 %v1317, 0.0
        %v1334 = vmax.f32 %v1318, 0.0
        %v1335 = vmax.f32 %v1319, 0.0
        %v1336 = vmax.f32 %v1320, 0.0
        %v1337 = vmax.f32 %v1321, 0.0
        %v1338 = vmax.f32 %v1322, 0.0
        %v1339 = vmax.f32 %v1323, 0.0
        %v1340 = vmax.f32 %v1324, 0.0
        %v1341 = vpack.c.bf16 %v1327, %v1325
        %v1342 = vpack.c.bf16 %v1328, %v1326
        %v1343 = vpack.c.bf16 %v1331, %v1329
        %v1344 = vpack.c.bf16 %v1332, %v1330
        %v1345 = vpack.c.bf16 %v1335, %v1333
        %v1346 = vpack.c.bf16 %v1336, %v1334
        %v1347 = vpack.c.bf16 %v1339, %v1337
        %v1348 = vpack.c.bf16 %v1340, %v1338
        %v1357 = vunpack.c.l.b16 %v1341
        %v1358 = vunpack.c.l.b16 %v1342
        %v1359 = vunpack.c.h.b16 %v1341
        %v1360 = vunpack.c.h.b16 %v1342
        %v1361 = vunpack.c.l.b16 %v1343
        %v1362 = vunpack.c.l.b16 %v1344
        %v1363 = vunpack.c.h.b16 %v1343
        %v1364 = vunpack.c.h.b16 %v1344
        %v1365 = vunpack.c.l.b16 %v1345
        %v1366 = vunpack.c.l.b16 %v1346
        %v1367 = vunpack.c.h.b16 %v1345
        %v1368 = vunpack.c.h.b16 %v1346
        %v1369 = vunpack.c.l.b16 %v1347
        %v1370 = vunpack.c.l.b16 %v1348
        %v1371 = vunpack.c.h.b16 %v1347
        %v1372 = vunpack.c.h.b16 %v1348
        %v1373 = vpack.c.b16 %v1358, %v1357
        %v1374 = vpack.c.b16 %v1360, %v1359
        %v1375 = vpack.c.b16 %v1362, %v1361
        %v1376 = vpack.c.b16 %v1364, %v1363
        %v1377 = vpack.c.b16 %v1366, %v1365
        %v1378 = vpack.c.b16 %v1368, %v1367
        %v1379 = vpack.c.b16 %v1370, %v1369
        %v1380 = vpack.c.b16 %v1372, %v1371
        %1389 = vst [vmem:[%s236] sm:$0xff] %v1373
        %1390 = vst [vmem:[%s236 + $0x8] sm:$0xff] %v1374
        %1391 = vst [vmem:[%s236 + $0x10] sm:$0xff] %v1375
        %1392 = vst [vmem:[%s236 + $0x18] sm:$0xff] %v1376
        %1393 = vst [vmem:[%s236 + $0x20] sm:$0xff] %v1377
        %1394 = vst [vmem:[%s236 + $0x28] sm:$0xff] %v1378
        %1395 = vst [vmem:[%s236 + $0x30] sm:$0xff] %v1379
        %1396 = vst [vmem:[%s236 + $0x38] sm:$0xff] %v1380
        %s1397 = sand.u32 %s139, 1
        %s1398 = scalar_lea.sflag [#allocation3], %s1397
        %s1399 = sand.u32 %s139, 1
        %s1400 = smul.addr %s1399, 64
        %s1401 = scalar_lea.vmem [#allocation2], %s1400
        // Predicated region
        $region37: #{tpu_custom_call.1} parent=35 // pred_check
          %p1402 = pneg %p149
        $region38: #{tpu_custom_call.1} parent=35 // pred_check_branch
          %1404 = sbr.rel (%p1402) target = $region40
        $region39: #{tpu_custom_call.1} parent=35 // pred_region
          %s1405 = smul.u32 8, %s23
          %s1407 = ssub.s32 1024, 1024
          %1408 = vsyncadd %s1398, %s1407
          %s1409 = smul.addr %s1405, 2
          %s1410 = smul.addr %s22, 16
          %s1411 = sadd.s32 %s1409, %s1410
          %s1412 = smul.addr %s1411, 64
          %s1413 = scalar_lea.hbm %s4, %s1412
          %s1414 = sshll.u32 %s1401, 4
          %s1415 = int_to_ptr.vmem [resolvable:$true] %s1414
          %1420 = dma.vmem_to_hbm [thread:$0]  %s1415, 1024, %s1413, %s1398, 128, 128, 8
        $region40: #{tpu_custom_call.1} parent=35 // pred_fallthru
          _
      $region36: #{tpu_custom_call.1} parent=5 // pred_fallthru
        _
      %p1421 = scmp.le.s32.totalorder 2, %s13
      // Predicated region
      $region41: #{tpu_custom_call.1} parent=5 // pred_check
        %p1422 = pneg %p1421
      $region42: #{tpu_custom_call.1} parent=5 // pred_check_branch
        %1424 = sbr.rel (%p1422) target = $region44
      $region43: #{tpu_custom_call.1} parent=5 // pred_region
        %s1425 = ssub.s32 %s13, 2
        // Predicated region
        $region45: #{tpu_custom_call.1} parent=43 // pred_check
          %p1426 = pneg %p155
        $region46: #{tpu_custom_call.1} parent=43 // pred_check_branch
          %1428 = sbr.rel (%p1426) target = $region48
        $region47: #{tpu_custom_call.1} parent=43 // pred_region
          %s1429 = sand.u32 %s140, 1
          %s1430 = scalar_lea.sflag [#allocation3], %s1429
          %s1431 = sand.u32 %s140, 1
          %s1432 = smul.addr %s1431, 64
          %s1433 = scalar_lea.vmem [#allocation2], %s1432
          %1434 = dma.done %s1430, 1024
        $region48: #{tpu_custom_call.1} parent=43 // pred_fallthru
          _
      $region44: #{tpu_custom_call.1} parent=5 // pred_fallthru
        _
    $region6: #{tpu_custom_call.1} parent=1 // loop_footer
      %s17 = sadd.s32 1, %s13
    $region7: #{tpu_custom_call.1} parent=1 // loop_footer_branch
      %12 = sbr.rel target = $region3
    $region8: #{tpu_custom_call.1} parent=1 // loop_exit
      _
    %1435 = vsyncpa [#allocation3], 1
    %s1436 = scalar_lea.sflag [#allocation3], 1
    %1437 = vsyncpa %s1436, 1

</llo_original>
